<compile_context>
chip_gen: v7x
topology: tpu7x:2x2x1
jax: 0.10.0
libtpu: 0.0.40
codegen_flags: <defaults>
</compile_context>

<pallas_src>
import numpy as np
import jax
import jax.numpy as jnp
from jax.experimental import pallas as pl
from jax.experimental.pallas import tpu as pltpu

POOL_H, POOL_W = 4, 5
SEQ = POOL_H * POOL_W   # 20 phrase positions produced by AdaptiveAvgPool2d((4, 5))


def _adaptive_pool_matrix(H, W):
    """M[h*W + w, i*POOL_W + j] = 1/area if pixel (h, w) lies in adaptive region (i, j)."""
    M = np.zeros((H * W, SEQ), dtype=np.float32)
    for i in range(POOL_H):
        hs = (i * H) // POOL_H
        he = -(-((i + 1) * H) // POOL_H)  # ceil
        for j in range(POOL_W):
            ws = (j * W) // POOL_W
            we = -(-((j + 1) * W) // POOL_W)
            area = float((he - hs) * (we - ws))
            for h in range(hs, he):
                for w in range(ws, we):
                    M[h * W + w, i * POOL_W + j] = 1.0 / area
    return jnp.asarray(M)


def _choose_tb(B, target):
    """Batch tile: multiple of 16 (bf16 sublane tile), capped at the MXU-matched
    target, and chosen so the grid keeps >= 2 steps when the batch allows (so a
    dual-TensorCore chip can shard the 'parallel' batch axis)."""
    if B <= 16:
        return 16
    half = -(-B // 2)                                  # ceil(B/2)
    return max(16, ((min(target, half) + 15) // 16) * 16)


def _vmem_estimate_bytes(tb, K, D):
    """Rough resident-VMEM estimate (lane/sublane padded, double buffers)."""
    rnd = lambda x, m: ((x + m - 1) // m) * m
    ctx = 2 * tb * rnd(K, 128) * 2                      # (tb, K) bf16, 2 buffers
    km = rnd(K, 16) * 128 * 2                           # (K, SEQ->128 lanes) bf16, single
    mask = 2 * tb * 128 * 4                             # (tb, SEQ->128) f32
    emb = 2 * tb * rnd(SEQ, 16) * rnd(D, 128) * 2       # (tb, SEQ, D) bf16
    out = 2 * tb * rnd(D, 128) * 4                      # (tb, D) f32
    return ctx + km + mask + emb + out


def _phrase_attn_kernel(ctx_ref, km_ref, mask_ref, emb_ref, out_ref):
    # ctx_ref : (TB, K)      bf16  flattened context tile, K = C*H*W
    # km_ref  : (K, SEQ)     bf16  fused pool+fc weights, resident once in VMEM
    # mask_ref: (TB, SEQ)    f32   precomputed (labels != 0)
    # emb_ref : (TB, SEQ, D) bf16  embedded, permuted to (seq, word_vec)
    # out_ref : (TB, D)      f32
    # fc bias intentionally dropped: a constant shift over SEQ cancels in softmax.
    scores = jnp.dot(ctx_ref[...], km_ref[...],
                     preferred_element_type=jnp.float32)                    # (TB, SEQ)
    m = jnp.max(scores, axis=-1, keepdims=True)
    e = jnp.exp(scores - m) * mask_ref[...]
    # single normalization of the masked exponentials (== softmax -> mask -> renorm)
    attn = e * pl.reciprocal(jnp.sum(e, axis=-1, keepdims=True), approx=True)
    emb = emb_ref[...].astype(jnp.float32)                                  # (TB, SEQ, D)
    # VPU weighted sum over the 20 positions (no M=1 MXU matmuls)
    out_ref[...] = jnp.sum(attn[:, :, None] * emb, axis=1)                  # (TB, D)


def phrase_attention(context, embedded, input_labels, fc_weight, fc_bias, *,
                     tb_target=128):
    """context: (B,C,H,W) f32; embedded: (B,D,SEQ) f32; input_labels: (B,SEQ,1) int.
    fc_weight: (1, C); fc_bias: (1,). Returns weighted_emb: (B, D) f32.
    tb_target: 128 (MXU rows on v5e); use 256 on v6e/v7x for huge batches."""
    B, C, H, W = context.shape
    D = embedded.shape[1]
    K = C * H * W
    assert embedded.shape == (B, D, SEQ)
    assert input_labels.shape[0] == B and input_labels.shape[1] == SEQ
    del fc_bias  # softmax-invariant; dropped from the kernel

    # Fused pool + fc weights: KM[c*HW + p, s] = fc_w[c] * pool[p, s]  -> (K, SEQ)
    pool_mat = _adaptive_pool_matrix(H, W)                                   # (HW, SEQ)
    km = (fc_weight.reshape(C, 1, 1).astype(jnp.float32)
          * pool_mat[None, :, :]).reshape(K, SEQ).astype(jnp.bfloat16)

    ctx_flat = context.reshape(B, K).astype(jnp.bfloat16)                    # (B, K)
    emb_perm = jnp.transpose(embedded, (0, 2, 1)).astype(jnp.bfloat16)       # (B, SEQ, D)
    mask = (input_labels.reshape(B, SEQ) != 0).astype(jnp.float32)           # (B, SEQ)

    # Batch tile + padding (keep >= 2 grid steps when possible for dual-TC chips).
    tb = _choose_tb(B, tb_target)
    Bp = ((B + tb - 1) // tb) * tb
    if Bp != B:
        pad = Bp - B
        ctx_flat = jnp.pad(ctx_flat, ((0, pad), (0, 0)))
        emb_perm = jnp.pad(emb_perm, ((0, pad), (0, 0), (0, 0)))
        mask = jnp.pad(mask, ((0, pad), (0, 0)), constant_values=1.0)  # keep denom nonzero

    # Advisory cost hint so XLA overlaps the surrounding prep ops with the call.
    cost = pl.CostEstimate(
        flops=2 * Bp * K * SEQ + 2 * Bp * SEQ * D,
        transcendentals=Bp * SEQ,
        bytes_accessed=Bp * K * 2 + K * SEQ * 2 + Bp * SEQ * 4
                       + Bp * SEQ * D * 2 + Bp * D * 4,
    )

    # VMEM budget guard for production-sized K (C*H*W). Beyond ~64 MiB physical
    # (v7x) this needs a K-tiled grid axis with a (tb, SEQ) f32 scores
    # accumulator rather than a larger limit.
    # TODO(synk): add the K-tiling path if K ever grows past the 64 MiB guard.
    cp_kwargs = dict(dimension_semantics=("parallel",))
    est = _vmem_estimate_bytes(tb, K, D)
    if est > 12 * 1024 * 1024:
        cp_kwargs["vmem_limit_bytes"] = min(int(est * 1.5) + (4 << 20), 64 << 20)

    out = pl.pallas_call(
        _phrase_attn_kernel,
        out_shape=jax.ShapeDtypeStruct((Bp, D), jnp.float32),
        grid=(Bp // tb,),
        in_specs=[
            pl.BlockSpec((tb, K), lambda b: (b, 0)),                  # context tile
            pl.BlockSpec(memory_space=pltpu.MemorySpace.VMEM),        # km resident once
            pl.BlockSpec((tb, SEQ), lambda b: (b, 0)),                # label-mask tile
            pl.BlockSpec((tb, SEQ, D), lambda b: (b, 0, 0)),          # embedded tile
        ],
        out_specs=pl.BlockSpec((tb, D), lambda b: (b, 0)),            # lane-dense output
        compiler_params=pltpu.CompilerParams(**cp_kwargs),
        cost_estimate=cost,
    )(ctx_flat, km, mask, emb_perm)
    return out[:B]


def _reference(context, embedded, input_labels, fc_weight, fc_bias):
    """Pure-f32 JAX port of the torch forward (correctness oracle)."""
    B, C, H, W = context.shape
    M = _adaptive_pool_matrix(H, W)
    pooled = context.reshape(B, C, H * W).astype(jnp.float32) @ M            # (B, C, SEQ)
    scores = jnp.einsum("bcs,c->bs", pooled, fc_weight[0].astype(jnp.float32)) + fc_bias[0]
    attn = jax.nn.softmax(scores, axis=1)
    mask = (input_labels[..., 0] != 0).astype(jnp.float32)
    attn = attn * mask
    attn = attn / jnp.sum(attn, axis=1, keepdims=True)
    emb = jnp.transpose(embedded, (0, 2, 1)).astype(jnp.float32)             # (B, SEQ, D)
    return jnp.einsum("bs,bsd->bd", attn, emb)


if __name__ == "__main__":
    # input_dim = C, word_vec_size = D. Small shapes; grid has 2 batch tiles.
    B, C, H, W, D = 64, 8, 16, 20, 128
    key = jax.random.PRNGKey(0)
    k_ctx, k_emb, k_lab, k_w, k_b = jax.random.split(key, 5)

    context = jax.random.normal(k_ctx, (B, C, H, W), dtype=jnp.float32)
    embedded = jax.random.normal(k_emb, (B, D, SEQ), dtype=jnp.float32)
    input_labels = jax.random.randint(k_lab, (B, SEQ, 1), 0, 3, dtype=jnp.int32)
    # guarantee at least one nonzero label per row (all-zero rows are 0/0 in the
    # torch code as well; not handled here on purpose)
    input_labels = input_labels.at[:, 0, 0].set(1)

    fc_weight = 0.1 * jax.random.normal(k_w, (1, C), dtype=jnp.float32)   # nn.Linear(C, 1).weight
    fc_bias = 0.1 * jax.random.normal(k_b, (1,), dtype=jnp.float32)       # nn.Linear(C, 1).bias

    out = phrase_attention(context, embedded, input_labels, fc_weight, fc_bias)
    out = jax.block_until_ready(out)

    ref = _reference(context, embedded, input_labels, fc_weight, fc_bias)
    assert out.shape == (B, D)
    # bf16 kernel inputs + approx reciprocal vs f32 reference => bf16-level tolerance
    np.testing.assert_allclose(np.asarray(out), np.asarray(ref), rtol=2e-2, atol=1.5e-2)
    print("KERNEL_OK")
</pallas_src>

<mosaic_0001>
module attributes {stable_mosaic.version = 11 : i64} {
  func.func @_phrase_attn_kernel(%arg0: i32, %arg1: memref<32x2560xbf16, #tpu.memory_space<vmem>>, %arg2: memref<2560x20xbf16, #tpu.memory_space<vmem>>, %arg3: memref<32x20xf32, #tpu.memory_space<vmem>>, %arg4: memref<32x20x128xbf16, #tpu.memory_space<vmem>>, %arg5: memref<32x128xf32, #tpu.memory_space<vmem>>) attributes {dimension_semantics = [#tpu.dimension_semantics<parallel>], iteration_bounds = array<i64: 2>, scalar_prefetch = 0 : i64, scratch_operands = 0 : i64, tpu.core_type = #tpu.core_type<tc>, window_params = [{transform_indices = @transform_0, window_bounds = array<i64: 32, 2560>}, {pipeline_mode = #tpu.pipeline_mode<synchronous>, transform_indices = @transform_1, window_bounds = array<i64: 2560, 20>}, {transform_indices = @transform_2, window_bounds = array<i64: 32, 20>}, {transform_indices = @transform_3, window_bounds = array<i64: 32, 20, 128>}, {transform_indices = @transform_4, window_bounds = array<i64: 32, 128>}]} {
    %c0 = arith.constant 0 : index
    %c0_0 = arith.constant 0 : index
    %0 = vector.load %arg1[%c0, %c0_0] : memref<32x2560xbf16, #tpu.memory_space<vmem>>, vector<32x2560xbf16>
    %c0_1 = arith.constant 0 : index
    %c0_2 = arith.constant 0 : index
    %1 = vector.load %arg2[%c0_1, %c0_2] : memref<2560x20xbf16, #tpu.memory_space<vmem>>, vector<2560x20xbf16>
    %cst = arith.constant dense<0.000000e+00> : vector<32x20xf32>
    %2 = tpu.matmul %0, %1, %cst {dimension_numbers = #tpu.dot_dimension_numbers<[1], [0], [0], [1], [0, 0, 1, 1], [], []>} : vector<32x2560xbf16>, vector<2560x20xbf16>, vector<32x20xf32> -> vector<32x20xf32>
    %cst_3 = arith.constant dense<0xFF800000> : vector<32xf32>
    %3 = vector.multi_reduction <maximumf>, %2, %cst_3 [1] : vector<32x20xf32> to vector<32xf32>
    %4 = vector.shape_cast %3 : vector<32xf32> to vector<32x1xf32>
    %5 = vector.broadcast %4 : vector<32x1xf32> to vector<32x20xf32>
    %6 = arith.subf %2, %5 : vector<32x20xf32>
    %7 = math.exp %6 : vector<32x20xf32>
    %c0_4 = arith.constant 0 : index
    %c0_5 = arith.constant 0 : index
    %8 = vector.load %arg3[%c0_4, %c0_5] : memref<32x20xf32, #tpu.memory_space<vmem>>, vector<32x20xf32>
    %9 = arith.mulf %7, %8 : vector<32x20xf32>
    %cst_6 = arith.constant dense<0.000000e+00> : vector<32xf32>
    %10 = vector.multi_reduction <add>, %9, %cst_6 [1] : vector<32x20xf32> to vector<32xf32>
    %11 = vector.shape_cast %10 : vector<32xf32> to vector<32x1xf32>
    %12 = tpu.reciprocal %11 {approx = true} : vector<32x1xf32> -> vector<32x1xf32>
    %13 = vector.broadcast %12 : vector<32x1xf32> to vector<32x20xf32>
    %14 = arith.mulf %9, %13 : vector<32x20xf32>
    %c0_7 = arith.constant 0 : index
    %c0_8 = arith.constant 0 : index
    %c0_9 = arith.constant 0 : index
    %15 = vector.load %arg4[%c0_7, %c0_8, %c0_9] : memref<32x20x128xbf16, #tpu.memory_space<vmem>>, vector<32x20x128xbf16>
    %16 = arith.extf %15 : vector<32x20x128xbf16> to vector<32x20x128xf32>
    %17 = vector.shape_cast %14 : vector<32x20xf32> to vector<32x20x1xf32>
    %18 = vector.broadcast %17 : vector<32x20x1xf32> to vector<32x20x128xf32>
    %19 = arith.mulf %18, %16 : vector<32x20x128xf32>
    %cst_10 = arith.constant dense<0.000000e+00> : vector<32x128xf32>
    %20 = vector.multi_reduction <add>, %19, %cst_10 [1] : vector<32x20x128xf32> to vector<32x128xf32>
    %c0_11 = arith.constant 0 : index
    %c0_12 = arith.constant 0 : index
    %21 = vector.load %arg5[%c0_11, %c0_12] : memref<32x128xf32, #tpu.memory_space<vmem>>, vector<32x128xf32>
    tpu.vector_store %arg5[%c0_11, %c0_12], %20 {strides = array<i32>} : memref<32x128xf32, #tpu.memory_space<vmem>>, vector<32x128xf32>,
    return
  }
  func.func @transform_0(%arg0: i32) -> (i32, i32) {
    %c0_i32 = arith.constant 0 : i32
    %c0_i32_0 = arith.constant 0 : i32
    return %arg0, %c0_i32 : i32, i32
  }
  func.func @transform_1(%arg0: i32) -> (i32, i32) {
    %c0_i32 = arith.constant 0 : i32
    %c0_i32_0 = arith.constant 0 : i32
    %c0_i32_1 = arith.constant 0 : i32
    return %c0_i32, %c0_i32_0 : i32, i32
  }
  func.func @transform_2(%arg0: i32) -> (i32, i32) {
    %c0_i32 = arith.constant 0 : i32
    %c0_i32_0 = arith.constant 0 : i32
    return %arg0, %c0_i32 : i32, i32
  }
  func.func @transform_3(%arg0: i32) -> (i32, i32, i32) {
    %c0_i32 = arith.constant 0 : i32
    %c0_i32_0 = arith.constant 0 : i32
    %c0_i32_1 = arith.constant 0 : i32
    return %arg0, %c0_i32, %c0_i32_0 : i32, i32, i32
  }
  func.func @transform_4(%arg0: i32) -> (i32, i32) {
    %c0_i32 = arith.constant 0 : i32
    %c0_i32_0 = arith.constant 0 : i32
    return %arg0, %c0_i32 : i32, i32
  }
}

</mosaic_0001>

<llo_original>
// kernel: tpu_custom_call.1
$region0: #{tpu_custom_call.1}
  #allocation0 [shape = 'u32[]', space=smem, size = 0x4, offset = 0x4, fixed_abs, tag = 'smem constant byte address 0x4 - core index']
  #allocation1 [shape = 'u32[144,128]{1,0:T(1,128)}', space=vmem, size = 0x12000, scoped, tag = 'internal scratch']
  %s0 = inlined_call_operand.vmem [shape: bf16[64,2560], index: 0, kind: input, shape index: {}]
  %s1 = inlined_call_operand.vmem [shape: bf16[2560,20], index: 1, kind: input, shape index: {}]
  %s2 = inlined_call_operand.vmem [shape: f32[64,20], index: 2, kind: input, shape index: {}]
  %s3 = inlined_call_operand.vmem [shape: bf16[64,20,128], index: 3, kind: input, shape index: {}]
  %s4 = inlined_call_operand.hbm [shape: f32[64,128], index: 4, kind: output, shape index: {}]
  %s5 = sld [smem:[#allocation0]]
  $region49: #{tpu_custom_call.1} parent=0
    _
  %s7 = ssub.s32 1, %s5
  %s8 = scalar_select 0, %s7, %s5
  $region1: #{tpu_custom_call.1} parent=0
    #allocation2 [shape = 'u8[32768]{0}', space=vmem, size = 0x8000, scoped, tag = 'output window, operand 0']
    #allocation3 [shape = 's32[2]{0}', space=sflag, size = 0x8, scoped, tag = 'scoped memory for tpu_custom_call.1']
    %9 = vsyncpa [#allocation3], 0
    %s10 = scalar_lea.sflag [#allocation3], 1
    %11 = vsyncpa %s10, 0
    loop: start=0, step=1, limit=4
    $region2: #{tpu_custom_call.1} parent=1 // loop_pre_header
      _
    $region3: #{tpu_custom_call.1} parent=1 // loop_header
      %s13 = sphi 0, %s17
      %p14 = scmp.ge.s32.totalorder %s13, 4
      %s23 = sphi 0, %s25
      %s26 = sphi 0, %s23
      %s27 = sphi 0, %s26
      %s43 = sphi 0, %s27
      %s47 = sphi 0, %s47
      %s49 = sphi 0, %s47
      %s50 = sphi 0, %s49
      %s64 = sphi 0, %s50
      %s70 = sphi 0, %s72
      %s73 = sphi 0, %s70
      %s74 = sphi 0, %s73
      %s90 = sphi 0, %s74
      %s96 = sphi 0, %s98
      %s99 = sphi 0, %s96
      %s100 = sphi 0, %s99
      %s116 = sphi 0, %s100
      %s122 = sphi 0, %s124
      %s125 = sphi 0, %s122
      %s126 = sphi 0, %s125
      %s142 = sphi 0, %s126
    $region4: #{tpu_custom_call.1} parent=1 // loop_header_branch
      %16 = sbr.rel (%p14) target = $region8
    $region5: #{tpu_custom_call.1} parent=1 // loop_body
      %s18 = ssub.s32 %s13, 1
      %s19 = ssub.s32 %s13, 2
      %s20 = sadd.s32 %s13, 1
      %s21 = ssub.s32 %s13, %s20
      %p22 = scmp.eq.s32.totalorder %s21, 0
      %s24 = sadd.s32 %s23, 1
      %s25 = scalar_select %p22, %s23, %s24
      %p28 = pneg %p22
      %p29 = scmp.eq.s32.totalorder %s13, 1
      %p30 = por %p28, %p29
      %p31 = scmp.ne.s32.totalorder %s23, %s26
      %p32 = scmp.eq.s32.totalorder %s13, 0
      %p33 = por %p31, %p32
      %p34 = scmp.ne.s32.totalorder %s23, %s26
      %p35 = scmp.eq.s32.totalorder %s18, 1
      %p36 = por %p34, %p35
      %p37 = scmp.ne.s32.totalorder %s26, %s27
      %p38 = scmp.eq.s32.totalorder %s18, 0
      %p39 = por %p37, %p38
      %p40 = scmp.ne.s32.totalorder %s26, %s27
      %p41 = scmp.eq.s32.totalorder %s19, 1
      %p42 = por %p40, %p41
      %p44 = scmp.ne.s32.totalorder %s27, %s43
      %p45 = scmp.eq.s32.totalorder %s19, 0
      %p46 = por %p44, %p45
      %s48 = sadd.s32 %s47, 1
      %p51 = scmp.eq.s32.totalorder %s13, 1
      %p52 = scmp.ne.s32.totalorder %s47, %s49
      %p53 = scmp.eq.s32.totalorder %s13, 0
      %p54 = por %p52, %p53
      %p55 = scmp.ne.s32.totalorder %s47, %s49
      %p56 = scmp.eq.s32.totalorder %s18, 1
      %p57 = por %p55, %p56
      %p58 = scmp.ne.s32.totalorder %s49, %s50
      %p59 = scmp.eq.s32.totalorder %s18, 0
      %p60 = por %p58, %p59
      %p61 = scmp.ne.s32.totalorder %s49, %s50
      %p62 = scmp.eq.s32.totalorder %s19, 1
      %p63 = por %p61, %p62
      %p65 = scmp.ne.s32.totalorder %s50, %s64
      %p66 = scmp.eq.s32.totalorder %s19, 0
      %p67 = por %p65, %p66
      %s68 = ssub.s32 %s13, %s20
      %p69 = scmp.eq.s32.totalorder %s68, 0
      %s71 = sadd.s32 %s70, 1
      %s72 = scalar_select %p69, %s70, %s71
      %p75 = pneg %p69
      %p76 = scmp.eq.s32.totalorder %s13, 1
      %p77 = por %p75, %p76
      %p78 = scmp.ne.s32.totalorder %s70, %s73
      %p79 = scmp.eq.s32.totalorder %s13, 0
      %p80 = por %p78, %p79
      %p81 = scmp.ne.s32.totalorder %s70, %s73
      %p82 = scmp.eq.s32.totalorder %s18, 1
      %p83 = por %p81, %p82
      %p84 = scmp.ne.s32.totalorder %s73, %s74
      %p85 = scmp.eq.s32.totalorder %s18, 0
      %p86 = por %p84, %p85
      %p87 = scmp.ne.s32.totalorder %s73, %s74
      %p88 = scmp.eq.s32.totalorder %s19, 1
      %p89 = por %p87, %p88
      %p91 = scmp.ne.s32.totalorder %s74, %s90
      %p92 = scmp.eq.s32.totalorder %s19, 0
      %p93 = por %p91, %p92
      %s94 = ssub.s32 %s13, %s20
      %p95 = scmp.eq.s32.totalorder %s94, 0
      %s97 = sadd.s32 %s96, 1
      %s98 = scalar_select %p95, %s96, %s97
      %p101 = pneg %p95
      %p102 = scmp.eq.s32.totalorder %s13, 1
      %p103 = por %p101, %p102
      %p104 = scmp.ne.s32.totalorder %s96, %s99
      %p105 = scmp.eq.s32.totalorder %s13, 0
      %p106 = por %p104, %p105
      %p107 = scmp.ne.s32.totalorder %s96, %s99
      %p108 = scmp.eq.s32.totalorder %s18, 1
      %p109 = por %p107, %p108
      %p110 = scmp.ne.s32.totalorder %s99, %s100
      %p111 = scmp.eq.s32.totalorder %s18, 0
      %p112 = por %p110, %p111
      %p113 = scmp.ne.s32.totalorder %s99, %s100
      %p114 = scmp.eq.s32.totalorder %s19, 1
      %p115 = por %p113, %p114
      %p117 = scmp.ne.s32.totalorder %s100, %s116
      %p118 = scmp.eq.s32.totalorder %s19, 0
      %p119 = por %p117, %p118
      %s120 = ssub.s32 %s13, %s20
      %p121 = scmp.eq.s32.totalorder %s120, 0
      %s123 = sadd.s32 %s122, 1
      %s124 = scalar_select %p121, %s122, %s123
      %p127 = pneg %p121
      %p128 = scmp.eq.s32.totalorder %s13, 1
      %p129 = por %p127, %p128
      %p130 = scmp.ne.s32.totalorder %s122, %s125
      %p131 = scmp.eq.s32.totalorder %s13, 0
      %p132 = por %p130, %p131
      %p133 = scmp.ne.s32.totalorder %s122, %s125
      %p134 = scmp.eq.s32.totalorder %s18, 1
      %p135 = por %p133, %p134
      %p136 = scmp.ne.s32.totalorder %s125, %s126
      %p137 = scmp.eq.s32.totalorder %s18, 0
      %p138 = por %p136, %p137
      %p139 = scmp.ne.s32.totalorder %s125, %s126
      %p140 = scmp.eq.s32.totalorder %s19, 1
      %p141 = por %p139, %p140
      %p143 = scmp.ne.s32.totalorder %s126, %s142
      %p144 = scmp.eq.s32.totalorder %s19, 0
      %p145 = por %p143, %p144
      %p146 = scmp.le.s32.totalorder 1, %s13
      %p147 = scmp.lt.s32.totalorder %s13, 3
      %p148 = pnand %p146, %p147
      %p149 = pneg %p148
      // Predicated region
      $region9: #{tpu_custom_call.1} parent=5 // pred_check
        _
      $region10: #{tpu_custom_call.1} parent=5 // pred_check_branch
        %151 = sbr.rel (%p148) target = $region12
      $region11: #{tpu_custom_call.1} parent=5 // pred_region
        %s152 = ssub.s32 %s13, 1
        // Predicated region
        $region13: #{tpu_custom_call.1} parent=11 // pred_check
          %p153 = pneg %p60
        $region14: #{tpu_custom_call.1} parent=11 // pred_check_branch
          %155 = sbr.rel (%p153) target = $region16
        $region15: #{tpu_custom_call.1} parent=11 // pred_region
          _
        $region16: #{tpu_custom_call.1} parent=11 // pred_fallthru
          _
      $region12: #{tpu_custom_call.1} parent=5 // pred_fallthru
        _
      %p156 = scmp.lt.s32.totalorder %s13, 2
      // Predicated region
      $region17: #{tpu_custom_call.1} parent=5 // pred_check
        %p157 = pneg %p156
      $region18: #{tpu_custom_call.1} parent=5 // pred_check_branch
        %159 = sbr.rel (%p157) target = $region20
      $region19: #{tpu_custom_call.1} parent=5 // pred_region
        // Predicated region
        $region21: #{tpu_custom_call.1} parent=19 // pred_check
          %p160 = pneg %p33
        $region22: #{tpu_custom_call.1} parent=19 // pred_check_branch
          %162 = sbr.rel (%p160) target = $region24
        $region23: #{tpu_custom_call.1} parent=19 // pred_region
          %s163 = smul.u32 4, %s13
          %p164 = scmp.lt.s32.totalorder %s163, 7
          %s165 = scalar_select %p164, %s163, 7
          %s166 = smul.addr %s165, 20
          %s167 = smul.addr %s166, 4
          %s168 = scalar_lea.vmem %s0, %s167
          %s169 = smul.u32 4, %s13
        $region24: #{tpu_custom_call.1} parent=19 // pred_fallthru
          _
        // Predicated region
        $region25: #{tpu_custom_call.1} parent=19 // pred_check
          %p170 = pneg %p80
        $region26: #{tpu_custom_call.1} parent=19 // pred_check_branch
          %172 = sbr.rel (%p170) target = $region28
        $region27: #{tpu_custom_call.1} parent=19 // pred_region
          %s173 = smul.u32 4, %s13
          %p174 = scmp.lt.s32.totalorder %s173, 7
          %s175 = scalar_select %p174, %s173, 7
          %s176 = smul.addr %s175, 8
          %s177 = scalar_lea.vmem %s2, %s176
          %s178 = smul.u32 4, %s13
        $region28: #{tpu_custom_call.1} parent=19 // pred_fallthru
          _
        // Predicated region
        $region29: #{tpu_custom_call.1} parent=19 // pred_check
          %p179 = pneg %p106
        $region30: #{tpu_custom_call.1} parent=19 // pred_check_branch
          %181 = sbr.rel (%p179) target = $region32
        $region31: #{tpu_custom_call.1} parent=19 // pred_region
          %s182 = smul.u32 32, %s13
          %p183 = scmp.lt.s32.totalorder %s182, 63
          %s184 = scalar_select %p183, %s182, 63
          %s185 = smul.addr %s184, 3
          %s186 = smul.addr %s185, 4
          %s187 = scalar_lea.vmem %s3, %s186
          %s188 = smul.u32 32, %s13
        $region32: #{tpu_custom_call.1} parent=19 // pred_fallthru
          _
      $region20: #{tpu_custom_call.1} parent=5 // pred_fallthru
        _
      %p189 = scmp.le.s32.totalorder 1, %s13
      %p190 = scmp.lt.s32.totalorder %s13, 3
      %p191 = pnand %p189, %p190
      %p192 = pneg %p191
      // Predicated region
      $region33: #{tpu_custom_call.1} parent=5 // pred_check
        _
      $region34: #{tpu_custom_call.1} parent=5 // pred_check_branch
        %194 = sbr.rel (%p191) target = $region36
      $region35: #{tpu_custom_call.1} parent=5 // pred_region
        %s195 = ssub.s32 %s13, 1
        %s196 = smul.u32 4, %s18
        %p197 = scmp.lt.s32.totalorder %s196, 7
        %s198 = scalar_select %p197, %s196, 7
        %s199 = smul.addr %s198, 20
        %s200 = smul.addr %s199, 4
        %s201 = scalar_lea.vmem %s0, %s200
        %p202 = pneg %p39
        %p203 = pneg %p36
        %p204 = pneg %p60
        %p205 = pneg %p57
        %s206 = smul.u32 4, %s18
        %p207 = scmp.lt.s32.totalorder %s206, 7
        %s208 = scalar_select %p207, %s206, 7
        %s209 = smul.addr %s208, 8
        %s210 = scalar_lea.vmem %s2, %s209
        %p211 = pneg %p86
        %p212 = pneg %p83
        %s213 = smul.u32 32, %s18
        %p214 = scmp.lt.s32.totalorder %s213, 63
        %s215 = scalar_select %p214, %s213, 63
        %s216 = smul.addr %s215, 3
        %s217 = smul.addr %s216, 4
        %s218 = scalar_lea.vmem %s3, %s217
        %p219 = pneg %p112
        %p220 = pneg %p109
        %p221 = pneg %p138
        %p222 = pneg %p135
        %s223 = sand.u32 %s125, 1
        %s224 = scalar_lea.sflag [#allocation3], %s223
        %s225 = sand.u32 %s125, 1
        %s226 = smul.addr %s225, 32
        %s227 = scalar_lea.vmem [#allocation2], %s226
        %s228 = smul.u32 4, %s18
        %p229 = scmp.lt.s32.totalorder %s228, 7
        %s230 = scalar_select %p229, %s228, 7
        %s231 = smul.addr %s230, 20
        %s232 = smul.addr %s231, 4
        %s233 = scalar_lea.vmem %s0, %s232
        %s234 = smul.u32 4, %s18
        %s235 = smul.u32 4, %s18
        %p236 = scmp.lt.s32.totalorder %s235, 7
        %s237 = scalar_select %p236, %s235, 7
        %s238 = smul.addr %s237, 8
        %s239 = scalar_lea.vmem %s2, %s238
        %s240 = smul.u32 4, %s18
        %s241 = smul.u32 32, %s18
        %p242 = scmp.lt.s32.totalorder %s241, 63
        %s243 = scalar_select %p242, %s241, 63
        %s244 = smul.addr %s243, 3
        %s245 = smul.addr %s244, 4
        %s246 = scalar_lea.vmem %s3, %s245
        %s247 = smul.u32 32, %s18
        %s248 = smul.u32 4, %s18
        %v250 = vld [vmem:[%s233] sm:$0xff]
        %v251 = vld [vmem:[%s233 + $0x8] sm:$0xff]
        %v252 = vld [vmem:[%s233 + $0x10] sm:$0xff]
        %v253 = vld [vmem:[%s233 + $0x18] sm:$0xff]
        %v254 = vld [vmem:[%s233 + $0x20] sm:$0xff]
        %v255 = vld [vmem:[%s233 + $0x28] sm:$0xff]
        %v256 = vld [vmem:[%s233 + $0x30] sm:$0xff]
        %v257 = vld [vmem:[%s233 + $0x38] sm:$0xff]
        %v258 = vld [vmem:[%s233 + $0x40] sm:$0xff]
        %v259 = vld [vmem:[%s233 + $0x48] sm:$0xff]
        %v260 = vld [vmem:[%s233 + $0x50] sm:$0xff]
        %v261 = vld [vmem:[%s233 + $0x58] sm:$0xff]
        %v262 = vld [vmem:[%s233 + $0x60] sm:$0xff]
        %v263 = vld [vmem:[%s233 + $0x68] sm:$0xff]
        %v264 = vld [vmem:[%s233 + $0x70] sm:$0xff]
        %v265 = vld [vmem:[%s233 + $0x78] sm:$0xff]
        %v266 = vld [vmem:[%s233 + $0x80] sm:$0xff]
        %v267 = vld [vmem:[%s233 + $0x88] sm:$0xff]
        %v268 = vld [vmem:[%s233 + $0x90] sm:$0xff]
        %v269 = vld [vmem:[%s233 + $0x98] sm:$0xff]
        %v270 = vld [vmem:[%s233 + $0xa0] sm:$0xff]
        %v271 = vld [vmem:[%s233 + $0xa8] sm:$0xff]
        %v272 = vld [vmem:[%s233 + $0xb0] sm:$0xff]
        %v273 = vld [vmem:[%s233 + $0xb8] sm:$0xff]
        %v274 = vld [vmem:[%s233 + $0xc0] sm:$0xff]
        %v275 = vld [vmem:[%s233 + $0xc8] sm:$0xff]
        %v276 = vld [vmem:[%s233 + $0xd0] sm:$0xff]
        %v277 = vld [vmem:[%s233 + $0xd8] sm:$0xff]
        %v278 = vld [vmem:[%s233 + $0xe0] sm:$0xff]
        %v279 = vld [vmem:[%s233 + $0xe8] sm:$0xff]
        %v280 = vld [vmem:[%s233 + $0xf0] sm:$0xff]
        %v281 = vld [vmem:[%s233 + $0xf8] sm:$0xff]
        %v282 = vld [vmem:[%s233 + $0x100] sm:$0xff]
        %v283 = vld [vmem:[%s233 + $0x108] sm:$0xff]
        %v284 = vld [vmem:[%s233 + $0x110] sm:$0xff]
        %v285 = vld [vmem:[%s233 + $0x118] sm:$0xff]
        %v286 = vld [vmem:[%s233 + $0x120] sm:$0xff]
        %v287 = vld [vmem:[%s233 + $0x128] sm:$0xff]
        %v288 = vld [vmem:[%s233 + $0x130] sm:$0xff]
        %v289 = vld [vmem:[%s233 + $0x138] sm:$0xff]
        %v290 = vld [vmem:[%s1] sm:$0xf]
        %v291 = vld [vmem:[%s1 + $0x4] sm:$0xf]
        %v292 = vld [vmem:[%s1 + $0x8] sm:$0xf]
        %v293 = vld [vmem:[%s1 + $0xc] sm:$0xf]
        %v294 = vld [vmem:[%s1 + $0x10] sm:$0xf]
        %v295 = vld [vmem:[%s1 + $0x14] sm:$0xf]
        %v296 = vld [vmem:[%s1 + $0x18] sm:$0xf]
        %v297 = vld [vmem:[%s1 + $0x1c] sm:$0xf]
        %v298 = vld [vmem:[%s1 + $0x20] sm:$0xf]
        %v299 = vld [vmem:[%s1 + $0x24] sm:$0xf]
        %v300 = vld [vmem:[%s1 + $0x28] sm:$0xf]
        %v301 = vld [vmem:[%s1 + $0x2c] sm:$0xf]
        %v302 = vld [vmem:[%s1 + $0x30] sm:$0xf]
        %v303 = vld [vmem:[%s1 + $0x34] sm:$0xf]
        %v304 = vld [vmem:[%s1 + $0x38] sm:$0xf]
        %v305 = vld [vmem:[%s1 + $0x3c] sm:$0xf]
        %v306 = vld [vmem:[%s1 + $0x40] sm:$0xf]
        %v307 = vld [vmem:[%s1 + $0x44] sm:$0xf]
        %v308 = vld [vmem:[%s1 + $0x48] sm:$0xf]
        %v309 = vld [vmem:[%s1 + $0x4c] sm:$0xf]
        %v310 = vld [vmem:[%s1 + $0x50] sm:$0xf]
        %v311 = vld [vmem:[%s1 + $0x54] sm:$0xf]
        %v312 = vld [vmem:[%s1 + $0x58] sm:$0xf]
        %v313 = vld [vmem:[%s1 + $0x5c] sm:$0xf]
        %v314 = vld [vmem:[%s1 + $0x60] sm:$0xf]
        %v315 = vld [vmem:[%s1 + $0x64] sm:$0xf]
        %v316 = vld [vmem:[%s1 + $0x68] sm:$0xf]
        %v317 = vld [vmem:[%s1 + $0x6c] sm:$0xf]
        %v318 = vld [vmem:[%s1 + $0x70] sm:$0xf]
        %v319 = vld [vmem:[%s1 + $0x74] sm:$0xf]
        %v320 = vld [vmem:[%s1 + $0x78] sm:$0xf]
        %v321 = vld [vmem:[%s1 + $0x7c] sm:$0xf]
        %v322 = vld [vmem:[%s1 + $0x80] sm:$0xf]
        %v323 = vld [vmem:[%s1 + $0x84] sm:$0xf]
        %v324 = vld [vmem:[%s1 + $0x88] sm:$0xf]
        %v325 = vld [vmem:[%s1 + $0x8c] sm:$0xf]
        %v326 = vld [vmem:[%s1 + $0x90] sm:$0xf]
        %v327 = vld [vmem:[%s1 + $0x94] sm:$0xf]
        %v328 = vld [vmem:[%s1 + $0x98] sm:$0xf]
        %v329 = vld [vmem:[%s1 + $0x9c] sm:$0xf]
        %v330 = vld [vmem:[%s1 + $0xa0] sm:$0xf]
        %v331 = vld [vmem:[%s1 + $0xa4] sm:$0xf]
        %v332 = vld [vmem:[%s1 + $0xa8] sm:$0xf]
        %v333 = vld [vmem:[%s1 + $0xac] sm:$0xf]
        %v334 = vld [vmem:[%s1 + $0xb0] sm:$0xf]
        %v335 = vld [vmem:[%s1 + $0xb4] sm:$0xf]
        %v336 = vld [vmem:[%s1 + $0xb8] sm:$0xf]
        %v337 = vld [vmem:[%s1 + $0xbc] sm:$0xf]
        %v338 = vld [vmem:[%s1 + $0xc0] sm:$0xf]
        %v339 = vld [vmem:[%s1 + $0xc4] sm:$0xf]
        %v340 = vld [vmem:[%s1 + $0xc8] sm:$0xf]
        %v341 = vld [vmem:[%s1 + $0xcc] sm:$0xf]
        %v342 = vld [vmem:[%s1 + $0xd0] sm:$0xf]
        %v343 = vld [vmem:[%s1 + $0xd4] sm:$0xf]
        %v344 = vld [vmem:[%s1 + $0xd8] sm:$0xf]
        %v345 = vld [vmem:[%s1 + $0xdc] sm:$0xf]
        %v346 = vld [vmem:[%s1 + $0xe0] sm:$0xf]
        %v347 = vld [vmem:[%s1 + $0xe4] sm:$0xf]
        %v348 = vld [vmem:[%s1 + $0xe8] sm:$0xf]
        %v349 = vld [vmem:[%s1 + $0xec] sm:$0xf]
        %v350 = vld [vmem:[%s1 + $0xf0] sm:$0xf]
        %v351 = vld [vmem:[%s1 + $0xf4] sm:$0xf]
        %v352 = vld [vmem:[%s1 + $0xf8] sm:$0xf]
        %v353 = vld [vmem:[%s1 + $0xfc] sm:$0xf]
        %v354 = vld [vmem:[%s1 + $0x100] sm:$0xf]
        %v355 = vld [vmem:[%s1 + $0x104] sm:$0xf]
        %v356 = vld [vmem:[%s1 + $0x108] sm:$0xf]
        %v357 = vld [vmem:[%s1 + $0x10c] sm:$0xf]
        %v358 = vld [vmem:[%s1 + $0x110] sm:$0xf]
        %v359 = vld [vmem:[%s1 + $0x114] sm:$0xf]
        %v360 = vld [vmem:[%s1 + $0x118] sm:$0xf]
        %v361 = vld [vmem:[%s1 + $0x11c] sm:$0xf]
        %v362 = vld [vmem:[%s1 + $0x120] sm:$0xf]
        %v363 = vld [vmem:[%s1 + $0x124] sm:$0xf]
        %v364 = vld [vmem:[%s1 + $0x128] sm:$0xf]
        %v365 = vld [vmem:[%s1 + $0x12c] sm:$0xf]
        %v366 = vld [vmem:[%s1 + $0x130] sm:$0xf]
        %v367 = vld [vmem:[%s1 + $0x134] sm:$0xf]
        %v368 = vld [vmem:[%s1 + $0x138] sm:$0xf]
        %v369 = vld [vmem:[%s1 + $0x13c] sm:$0xf]
        %v370 = vld [vmem:[%s1 + $0x140] sm:$0xf]
        %v371 = vld [vmem:[%s1 + $0x144] sm:$0xf]
        %v372 = vld [vmem:[%s1 + $0x148] sm:$0xf]
        %v373 = vld [vmem:[%s1 + $0x14c] sm:$0xf]
        %v374 = vld [vmem:[%s1 + $0x150] sm:$0xf]
        %v375 = vld [vmem:[%s1 + $0x154] sm:$0xf]
        %v376 = vld [vmem:[%s1 + $0x158] sm:$0xf]
        %v377 = vld [vmem:[%s1 + $0x15c] sm:$0xf]
        %v378 = vld [vmem:[%s1 + $0x160] sm:$0xf]
        %v379 = vld [vmem:[%s1 + $0x164] sm:$0xf]
        %v380 = vld [vmem:[%s1 + $0x168] sm:$0xf]
        %v381 = vld [vmem:[%s1 + $0x16c] sm:$0xf]
        %v382 = vld [vmem:[%s1 + $0x170] sm:$0xf]
        %v383 = vld [vmem:[%s1 + $0x174] sm:$0xf]
        %v384 = vld [vmem:[%s1 + $0x178] sm:$0xf]
        %v385 = vld [vmem:[%s1 + $0x17c] sm:$0xf]
        %v386 = vld [vmem:[%s1 + $0x180] sm:$0xf]
        %v387 = vld [vmem:[%s1 + $0x184] sm:$0xf]
        %v388 = vld [vmem:[%s1 + $0x188] sm:$0xf]
        %v389 = vld [vmem:[%s1 + $0x18c] sm:$0xf]
        %v390 = vld [vmem:[%s1 + $0x190] sm:$0xf]
        %v391 = vld [vmem:[%s1 + $0x194] sm:$0xf]
        %v392 = vld [vmem:[%s1 + $0x198] sm:$0xf]
        %v393 = vld [vmem:[%s1 + $0x19c] sm:$0xf]
        %v394 = vld [vmem:[%s1 + $0x1a0] sm:$0xf]
        %v395 = vld [vmem:[%s1 + $0x1a4] sm:$0xf]
        %v396 = vld [vmem:[%s1 + $0x1a8] sm:$0xf]
        %v397 = vld [vmem:[%s1 + $0x1ac] sm:$0xf]
        %v398 = vld [vmem:[%s1 + $0x1b0] sm:$0xf]
        %v399 = vld [vmem:[%s1 + $0x1b4] sm:$0xf]
        %v400 = vld [vmem:[%s1 + $0x1b8] sm:$0xf]
        %v401 = vld [vmem:[%s1 + $0x1bc] sm:$0xf]
        %v402 = vld [vmem:[%s1 + $0x1c0] sm:$0xf]
        %v403 = vld [vmem:[%s1 + $0x1c4] sm:$0xf]
        %v404 = vld [vmem:[%s1 + $0x1c8] sm:$0xf]
        %v405 = vld [vmem:[%s1 + $0x1cc] sm:$0xf]
        %v406 = vld [vmem:[%s1 + $0x1d0] sm:$0xf]
        %v407 = vld [vmem:[%s1 + $0x1d4] sm:$0xf]
        %v408 = vld [vmem:[%s1 + $0x1d8] sm:$0xf]
        %v409 = vld [vmem:[%s1 + $0x1dc] sm:$0xf]
        %v410 = vld [vmem:[%s1 + $0x1e0] sm:$0xf]
        %v411 = vld [vmem:[%s1 + $0x1e4] sm:$0xf]
        %v412 = vld [vmem:[%s1 + $0x1e8] sm:$0xf]
        %v413 = vld [vmem:[%s1 + $0x1ec] sm:$0xf]
        %v414 = vld [vmem:[%s1 + $0x1f0] sm:$0xf]
        %v415 = vld [vmem:[%s1 + $0x1f4] sm:$0xf]
        %v416 = vld [vmem:[%s1 + $0x1f8] sm:$0xf]
        %v417 = vld [vmem:[%s1 + $0x1fc] sm:$0xf]
        %v418 = vld [vmem:[%s1 + $0x200] sm:$0xf]
        %v419 = vld [vmem:[%s1 + $0x204] sm:$0xf]
        %v420 = vld [vmem:[%s1 + $0x208] sm:$0xf]
        %v421 = vld [vmem:[%s1 + $0x20c] sm:$0xf]
        %v422 = vld [vmem:[%s1 + $0x210] sm:$0xf]
        %v423 = vld [vmem:[%s1 + $0x214] sm:$0xf]
        %v424 = vld [vmem:[%s1 + $0x218] sm:$0xf]
        %v425 = vld [vmem:[%s1 + $0x21c] sm:$0xf]
        %v426 = vld [vmem:[%s1 + $0x220] sm:$0xf]
        %v427 = vld [vmem:[%s1 + $0x224] sm:$0xf]
        %v428 = vld [vmem:[%s1 + $0x228] sm:$0xf]
        %v429 = vld [vmem:[%s1 + $0x22c] sm:$0xf]
        %v430 = vld [vmem:[%s1 + $0x230] sm:$0xf]
        %v431 = vld [vmem:[%s1 + $0x234] sm:$0xf]
        %v432 = vld [vmem:[%s1 + $0x238] sm:$0xf]
        %v433 = vld [vmem:[%s1 + $0x23c] sm:$0xf]
        %v434 = vld [vmem:[%s1 + $0x240] sm:$0xf]
        %v435 = vld [vmem:[%s1 + $0x244] sm:$0xf]
        %v436 = vld [vmem:[%s1 + $0x248] sm:$0xf]
        %v437 = vld [vmem:[%s1 + $0x24c] sm:$0xf]
        %v438 = vld [vmem:[%s1 + $0x250] sm:$0xf]
        %v439 = vld [vmem:[%s1 + $0x254] sm:$0xf]
        %v440 = vld [vmem:[%s1 + $0x258] sm:$0xf]
        %v441 = vld [vmem:[%s1 + $0x25c] sm:$0xf]
        %v442 = vld [vmem:[%s1 + $0x260] sm:$0xf]
        %v443 = vld [vmem:[%s1 + $0x264] sm:$0xf]
        %v444 = vld [vmem:[%s1 + $0x268] sm:$0xf]
        %v445 = vld [vmem:[%s1 + $0x26c] sm:$0xf]
        %v446 = vld [vmem:[%s1 + $0x270] sm:$0xf]
        %v447 = vld [vmem:[%s1 + $0x274] sm:$0xf]
        %v448 = vld [vmem:[%s1 + $0x278] sm:$0xf]
        %v449 = vld [vmem:[%s1 + $0x27c] sm:$0xf]
        %v450 = vld [vmem:[%s1 + $0x280] sm:$0xf]
        %v451 = vld [vmem:[%s1 + $0x284] sm:$0xf]
        %v452 = vld [vmem:[%s1 + $0x288] sm:$0xf]
        %v453 = vld [vmem:[%s1 + $0x28c] sm:$0xf]
        %v454 = vld [vmem:[%s1 + $0x290] sm:$0xf]
        %v455 = vld [vmem:[%s1 + $0x294] sm:$0xf]
        %v456 = vld [vmem:[%s1 + $0x298] sm:$0xf]
        %v457 = vld [vmem:[%s1 + $0x29c] sm:$0xf]
        %v458 = vld [vmem:[%s1 + $0x2a0] sm:$0xf]
        %v459 = vld [vmem:[%s1 + $0x2a4] sm:$0xf]
        %v460 = vld [vmem:[%s1 + $0x2a8] sm:$0xf]
        %v461 = vld [vmem:[%s1 + $0x2ac] sm:$0xf]
        %v462 = vld [vmem:[%s1 + $0x2b0] sm:$0xf]
        %v463 = vld [vmem:[%s1 + $0x2b4] sm:$0xf]
        %v464 = vld [vmem:[%s1 + $0x2b8] sm:$0xf]
        %v465 = vld [vmem:[%s1 + $0x2bc] sm:$0xf]
        %v466 = vld [vmem:[%s1 + $0x2c0] sm:$0xf]
        %v467 = vld [vmem:[%s1 + $0x2c4] sm:$0xf]
        %v468 = vld [vmem:[%s1 + $0x2c8] sm:$0xf]
        %v469 = vld [vmem:[%s1 + $0x2cc] sm:$0xf]
        %v470 = vld [vmem:[%s1 + $0x2d0] sm:$0xf]
        %v471 = vld [vmem:[%s1 + $0x2d4] sm:$0xf]
        %v472 = vld [vmem:[%s1 + $0x2d8] sm:$0xf]
        %v473 = vld [vmem:[%s1 + $0x2dc] sm:$0xf]
        %v474 = vld [vmem:[%s1 + $0x2e0] sm:$0xf]
        %v475 = vld [vmem:[%s1 + $0x2e4] sm:$0xf]
        %v476 = vld [vmem:[%s1 + $0x2e8] sm:$0xf]
        %v477 = vld [vmem:[%s1 + $0x2ec] sm:$0xf]
        %v478 = vld [vmem:[%s1 + $0x2f0] sm:$0xf]
        %v479 = vld [vmem:[%s1 + $0x2f4] sm:$0xf]
        %v480 = vld [vmem:[%s1 + $0x2f8] sm:$0xf]
        %v481 = vld [vmem:[%s1 + $0x2fc] sm:$0xf]
        %v482 = vld [vmem:[%s1 + $0x300] sm:$0xf]
        %v483 = vld [vmem:[%s1 + $0x304] sm:$0xf]
        %v484 = vld [vmem:[%s1 + $0x308] sm:$0xf]
        %v485 = vld [vmem:[%s1 + $0x30c] sm:$0xf]
        %v486 = vld [vmem:[%s1 + $0x310] sm:$0xf]
        %v487 = vld [vmem:[%s1 + $0x314] sm:$0xf]
        %v488 = vld [vmem:[%s1 + $0x318] sm:$0xf]
        %v489 = vld [vmem:[%s1 + $0x31c] sm:$0xf]
        %v490 = vld [vmem:[%s1 + $0x320] sm:$0xf]
        %v491 = vld [vmem:[%s1 + $0x324] sm:$0xf]
        %v492 = vld [vmem:[%s1 + $0x328] sm:$0xf]
        %v493 = vld [vmem:[%s1 + $0x32c] sm:$0xf]
        %v494 = vld [vmem:[%s1 + $0x330] sm:$0xf]
        %v495 = vld [vmem:[%s1 + $0x334] sm:$0xf]
        %v496 = vld [vmem:[%s1 + $0x338] sm:$0xf]
        %v497 = vld [vmem:[%s1 + $0x33c] sm:$0xf]
        %v498 = vld [vmem:[%s1 + $0x340] sm:$0xf]
        %v499 = vld [vmem:[%s1 + $0x344] sm:$0xf]
        %v500 = vld [vmem:[%s1 + $0x348] sm:$0xf]
        %v501 = vld [vmem:[%s1 + $0x34c] sm:$0xf]
        %v502 = vld [vmem:[%s1 + $0x350] sm:$0xf]
        %v503 = vld [vmem:[%s1 + $0x354] sm:$0xf]
        %v504 = vld [vmem:[%s1 + $0x358] sm:$0xf]
        %v505 = vld [vmem:[%s1 + $0x35c] sm:$0xf]
        %v506 = vld [vmem:[%s1 + $0x360] sm:$0xf]
        %v507 = vld [vmem:[%s1 + $0x364] sm:$0xf]
        %v508 = vld [vmem:[%s1 + $0x368] sm:$0xf]
        %v509 = vld [vmem:[%s1 + $0x36c] sm:$0xf]
        %v510 = vld [vmem:[%s1 + $0x370] sm:$0xf]
        %v511 = vld [vmem:[%s1 + $0x374] sm:$0xf]
        %v512 = vld [vmem:[%s1 + $0x378] sm:$0xf]
        %v513 = vld [vmem:[%s1 + $0x37c] sm:$0xf]
        %v514 = vld [vmem:[%s1 + $0x380] sm:$0xf]
        %v515 = vld [vmem:[%s1 + $0x384] sm:$0xf]
        %v516 = vld [vmem:[%s1 + $0x388] sm:$0xf]
        %v517 = vld [vmem:[%s1 + $0x38c] sm:$0xf]
        %v518 = vld [vmem:[%s1 + $0x390] sm:$0xf]
        %v519 = vld [vmem:[%s1 + $0x394] sm:$0xf]
        %v520 = vld [vmem:[%s1 + $0x398] sm:$0xf]
        %v521 = vld [vmem:[%s1 + $0x39c] sm:$0xf]
        %v522 = vld [vmem:[%s1 + $0x3a0] sm:$0xf]
        %v523 = vld [vmem:[%s1 + $0x3a4] sm:$0xf]
        %v524 = vld [vmem:[%s1 + $0x3a8] sm:$0xf]
        %v525 = vld [vmem:[%s1 + $0x3ac] sm:$0xf]
        %v526 = vld [vmem:[%s1 + $0x3b0] sm:$0xf]
        %v527 = vld [vmem:[%s1 + $0x3b4] sm:$0xf]
        %v528 = vld [vmem:[%s1 + $0x3b8] sm:$0xf]
        %v529 = vld [vmem:[%s1 + $0x3bc] sm:$0xf]
        %v530 = vld [vmem:[%s1 + $0x3c0] sm:$0xf]
        %v531 = vld [vmem:[%s1 + $0x3c4] sm:$0xf]
        %v532 = vld [vmem:[%s1 + $0x3c8] sm:$0xf]
        %v533 = vld [vmem:[%s1 + $0x3cc] sm:$0xf]
        %v534 = vld [vmem:[%s1 + $0x3d0] sm:$0xf]
        %v535 = vld [vmem:[%s1 + $0x3d4] sm:$0xf]
        %v536 = vld [vmem:[%s1 + $0x3d8] sm:$0xf]
        %v537 = vld [vmem:[%s1 + $0x3dc] sm:$0xf]
        %v538 = vld [vmem:[%s1 + $0x3e0] sm:$0xf]
        %v539 = vld [vmem:[%s1 + $0x3e4] sm:$0xf]
        %v540 = vld [vmem:[%s1 + $0x3e8] sm:$0xf]
        %v541 = vld [vmem:[%s1 + $0x3ec] sm:$0xf]
        %v542 = vld [vmem:[%s1 + $0x3f0] sm:$0xf]
        %v543 = vld [vmem:[%s1 + $0x3f4] sm:$0xf]
        %v544 = vld [vmem:[%s1 + $0x3f8] sm:$0xf]
        %v545 = vld [vmem:[%s1 + $0x3fc] sm:$0xf]
        %v546 = vld [vmem:[%s1 + $0x400] sm:$0xf]
        %v547 = vld [vmem:[%s1 + $0x404] sm:$0xf]
        %v548 = vld [vmem:[%s1 + $0x408] sm:$0xf]
        %v549 = vld [vmem:[%s1 + $0x40c] sm:$0xf]
        %v550 = vld [vmem:[%s1 + $0x410] sm:$0xf]
        %v551 = vld [vmem:[%s1 + $0x414] sm:$0xf]
        %v552 = vld [vmem:[%s1 + $0x418] sm:$0xf]
        %v553 = vld [vmem:[%s1 + $0x41c] sm:$0xf]
        %v554 = vld [vmem:[%s1 + $0x420] sm:$0xf]
        %v555 = vld [vmem:[%s1 + $0x424] sm:$0xf]
        %v556 = vld [vmem:[%s1 + $0x428] sm:$0xf]
        %v557 = vld [vmem:[%s1 + $0x42c] sm:$0xf]
        %v558 = vld [vmem:[%s1 + $0x430] sm:$0xf]
        %v559 = vld [vmem:[%s1 + $0x434] sm:$0xf]
        %v560 = vld [vmem:[%s1 + $0x438] sm:$0xf]
        %v561 = vld [vmem:[%s1 + $0x43c] sm:$0xf]
        %v562 = vld [vmem:[%s1 + $0x440] sm:$0xf]
        %v563 = vld [vmem:[%s1 + $0x444] sm:$0xf]
        %v564 = vld [vmem:[%s1 + $0x448] sm:$0xf]
        %v565 = vld [vmem:[%s1 + $0x44c] sm:$0xf]
        %v566 = vld [vmem:[%s1 + $0x450] sm:$0xf]
        %v567 = vld [vmem:[%s1 + $0x454] sm:$0xf]
        %v568 = vld [vmem:[%s1 + $0x458] sm:$0xf]
        %v569 = vld [vmem:[%s1 + $0x45c] sm:$0xf]
        %v570 = vld [vmem:[%s1 + $0x460] sm:$0xf]
        %v571 = vld [vmem:[%s1 + $0x464] sm:$0xf]
        %v572 = vld [vmem:[%s1 + $0x468] sm:$0xf]
        %v573 = vld [vmem:[%s1 + $0x46c] sm:$0xf]
        %v574 = vld [vmem:[%s1 + $0x470] sm:$0xf]
        %v575 = vld [vmem:[%s1 + $0x474] sm:$0xf]
        %v576 = vld [vmem:[%s1 + $0x478] sm:$0xf]
        %v577 = vld [vmem:[%s1 + $0x47c] sm:$0xf]
        %v578 = vld [vmem:[%s1 + $0x480] sm:$0xf]
        %v579 = vld [vmem:[%s1 + $0x484] sm:$0xf]
        %v580 = vld [vmem:[%s1 + $0x488] sm:$0xf]
        %v581 = vld [vmem:[%s1 + $0x48c] sm:$0xf]
        %v582 = vld [vmem:[%s1 + $0x490] sm:$0xf]
        %v583 = vld [vmem:[%s1 + $0x494] sm:$0xf]
        %v584 = vld [vmem:[%s1 + $0x498] sm:$0xf]
        %v585 = vld [vmem:[%s1 + $0x49c] sm:$0xf]
        %v586 = vld [vmem:[%s1 + $0x4a0] sm:$0xf]
        %v587 = vld [vmem:[%s1 + $0x4a4] sm:$0xf]
        %v588 = vld [vmem:[%s1 + $0x4a8] sm:$0xf]
        %v589 = vld [vmem:[%s1 + $0x4ac] sm:$0xf]
        %v590 = vld [vmem:[%s1 + $0x4b0] sm:$0xf]
        %v591 = vld [vmem:[%s1 + $0x4b4] sm:$0xf]
        %v592 = vld [vmem:[%s1 + $0x4b8] sm:$0xf]
        %v593 = vld [vmem:[%s1 + $0x4bc] sm:$0xf]
        %v594 = vld [vmem:[%s1 + $0x4c0] sm:$0xf]
        %v595 = vld [vmem:[%s1 + $0x4c4] sm:$0xf]
        %v596 = vld [vmem:[%s1 + $0x4c8] sm:$0xf]
        %v597 = vld [vmem:[%s1 + $0x4cc] sm:$0xf]
        %v598 = vld [vmem:[%s1 + $0x4d0] sm:$0xf]
        %v599 = vld [vmem:[%s1 + $0x4d4] sm:$0xf]
        %v600 = vld [vmem:[%s1 + $0x4d8] sm:$0xf]
        %v601 = vld [vmem:[%s1 + $0x4dc] sm:$0xf]
        %v602 = vld [vmem:[%s1 + $0x4e0] sm:$0xf]
        %v603 = vld [vmem:[%s1 + $0x4e4] sm:$0xf]
        %v604 = vld [vmem:[%s1 + $0x4e8] sm:$0xf]
        %v605 = vld [vmem:[%s1 + $0x4ec] sm:$0xf]
        %v606 = vld [vmem:[%s1 + $0x4f0] sm:$0xf]
        %v607 = vld [vmem:[%s1 + $0x4f4] sm:$0xf]
        %v608 = vld [vmem:[%s1 + $0x4f8] sm:$0xf]
        %v609 = vld [vmem:[%s1 + $0x4fc] sm:$0xf]
        %v650 = vunpack.c.l.b16 %v250
        %v651 = vunpack.c.h.b16 %v250
        %v652 = vunpack.c.l.b16 %v251
        %v653 = vunpack.c.h.b16 %v251
        %v654 = vunpack.c.l.b16 %v252
        %v655 = vunpack.c.h.b16 %v252
        %v656 = vunpack.c.l.b16 %v253
        %v657 = vunpack.c.h.b16 %v253
        %v658 = vunpack.c.l.b16 %v254
        %v659 = vunpack.c.h.b16 %v254
        %v660 = vunpack.c.l.b16 %v255
        %v661 = vunpack.c.h.b16 %v255
        %v662 = vunpack.c.l.b16 %v256
        %v663 = vunpack.c.h.b16 %v256
        %v664 = vunpack.c.l.b16 %v257
        %v665 = vunpack.c.h.b16 %v257
        %v666 = vunpack.c.l.b16 %v258
        %v667 = vunpack.c.h.b16 %v258
        %v668 = vunpack.c.l.b16 %v259
        %v669 = vunpack.c.h.b16 %v259
        %v670 = vunpack.c.l.b16 %v260
        %v671 = vunpack.c.h.b16 %v260
        %v672 = vunpack.c.l.b16 %v261
        %v673 = vunpack.c.h.b16 %v261
        %v674 = vunpack.c.l.b16 %v262
        %v675 = vunpack.c.h.b16 %v262
        %v676 = vunpack.c.l.b16 %v263
        %v677 = vunpack.c.h.b16 %v263
        %v678 = vunpack.c.l.b16 %v264
        %v679 = vunpack.c.h.b16 %v264
        %v680 = vunpack.c.l.b16 %v265
        %v681 = vunpack.c.h.b16 %v265
        %v682 = vunpack.c.l.b16 %v266
        %v683 = vunpack.c.h.b16 %v266
        %v684 = vunpack.c.l.b16 %v267
        %v685 = vunpack.c.h.b16 %v267
        %v686 = vunpack.c.l.b16 %v268
        %v687 = vunpack.c.h.b16 %v268
        %v688 = vunpack.c.l.b16 %v269
        %v689 = vunpack.c.h.b16 %v269
        %v690 = vunpack.c.l.b16 %v270
        %v691 = vunpack.c.h.b16 %v270
        %v692 = vunpack.c.l.b16 %v271
        %v693 = vunpack.c.h.b16 %v271
        %v694 = vunpack.c.l.b16 %v272
        %v695 = vunpack.c.h.b16 %v272
        %v696 = vunpack.c.l.b16 %v273
        %v697 = vunpack.c.h.b16 %v273
        %v698 = vunpack.c.l.b16 %v274
        %v699 = vunpack.c.h.b16 %v274
        %v700 = vunpack.c.l.b16 %v275
        %v701 = vunpack.c.h.b16 %v275
        %v702 = vunpack.c.l.b16 %v276
        %v703 = vunpack.c.h.b16 %v276
        %v704 = vunpack.c.l.b16 %v277
        %v705 = vunpack.c.h.b16 %v277
        %v706 = vunpack.c.l.b16 %v278
        %v707 = vunpack.c.h.b16 %v278
        %v708 = vunpack.c.l.b16 %v279
        %v709 = vunpack.c.h.b16 %v279
        %v710 = vunpack.c.l.b16 %v280
        %v711 = vunpack.c.h.b16 %v280
        %v712 = vunpack.c.l.b16 %v281
        %v713 = vunpack.c.h.b16 %v281
        %v714 = vunpack.c.l.b16 %v282
        %v715 = vunpack.c.h.b16 %v282
        %v716 = vunpack.c.l.b16 %v283
        %v717 = vunpack.c.h.b16 %v283
        %v718 = vunpack.c.l.b16 %v284
        %v719 = vunpack.c.h.b16 %v284
        %v720 = vunpack.c.l.b16 %v285
        %v721 = vunpack.c.h.b16 %v285
        %v722 = vunpack.c.l.b16 %v286
        %v723 = vunpack.c.h.b16 %v286
        %v724 = vunpack.c.l.b16 %v287
        %v725 = vunpack.c.h.b16 %v287
        %v726 = vunpack.c.l.b16 %v288
        %v727 = vunpack.c.h.b16 %v288
        %v728 = vunpack.c.l.b16 %v289
        %v729 = vunpack.c.h.b16 %v289
        %v730 = vpack.c.b16 %v670, %v650
        %v731 = vpack.c.b16 %v671, %v651
        %v732 = vpack.c.b16 %v672, %v652
        %v733 = vpack.c.b16 %v673, %v653
        %v734 = vpack.c.b16 %v674, %v654
        %v735 = vpack.c.b16 %v675, %v655
        %v736 = vpack.c.b16 %v676, %v656
        %v737 = vpack.c.b16 %v677, %v657
        %v738 = vpack.c.b16 %v678, %v658
        %v739 = vpack.c.b16 %v679, %v659
        %v740 = vpack.c.b16 %v680, %v660
        %v741 = vpack.c.b16 %v681, %v661
        %v742 = vpack.c.b16 %v682, %v662
        %v743 = vpack.c.b16 %v683, %v663
        %v744 = vpack.c.b16 %v684, %v664
        %v745 = vpack.c.b16 %v685, %v665
        %v746 = vpack.c.b16 %v686, %v666
        %v747 = vpack.c.b16 %v687, %v667
        %v748 = vpack.c.b16 %v688, %v668
        %v749 = vpack.c.b16 %v689, %v669
        %v750 = vpack.c.b16 %v710, %v690
        %v751 = vpack.c.b16 %v711, %v691
        %v752 = vpack.c.b16 %v712, %v692
        %v753 = vpack.c.b16 %v713, %v693
        %v754 = vpack.c.b16 %v714, %v694
        %v755 = vpack.c.b16 %v715, %v695
        %v756 = vpack.c.b16 %v716, %v696
        %v757 = vpack.c.b16 %v717, %v697
        %v758 = vpack.c.b16 %v718, %v698
        %v759 = vpack.c.b16 %v719, %v699
        %v760 = vpack.c.b16 %v720, %v700
        %v761 = vpack.c.b16 %v721, %v701
        %v762 = vpack.c.b16 %v722, %v702
        %v763 = vpack.c.b16 %v723, %v703
        %v764 = vpack.c.b16 %v724, %v704
        %v765 = vpack.c.b16 %v725, %v705
        %v766 = vpack.c.b16 %v726, %v706
        %v767 = vpack.c.b16 %v727, %v707
        %v768 = vpack.c.b16 %v728, %v708
        %v769 = vpack.c.b16 %v729, %v709
        %v1130 = vunpack.c.l.b16 %v290
        %v1131 = vunpack.c.l.b16 %v291
        %v1132 = vunpack.c.l.b16 %v292
        %v1133 = vunpack.c.l.b16 %v293
        %v1134 = vunpack.c.l.b16 %v294
        %v1135 = vunpack.c.l.b16 %v295
        %v1136 = vunpack.c.l.b16 %v296
        %v1137 = vunpack.c.l.b16 %v297
        %v1138 = vunpack.c.l.b16 %v298
        %v1139 = vunpack.c.l.b16 %v299
        %v1140 = vunpack.c.l.b16 %v300
        %v1141 = vunpack.c.l.b16 %v301
        %v1142 = vunpack.c.l.b16 %v302
        %v1143 = vunpack.c.l.b16 %v303
        %v1144 = vunpack.c.l.b16 %v304
        %v1145 = vunpack.c.l.b16 %v305
        %v1146 = vunpack.c.l.b16 %v306
        %v1147 = vunpack.c.l.b16 %v307
        %v1148 = vunpack.c.l.b16 %v308
        %v1149 = vunpack.c.l.b16 %v309
        %v1150 = vunpack.c.l.b16 %v310
        %v1151 = vunpack.c.l.b16 %v311
        %v1152 = vunpack.c.l.b16 %v312
        %v1153 = vunpack.c.l.b16 %v313
        %v1154 = vunpack.c.l.b16 %v314
        %v1155 = vunpack.c.l.b16 %v315
        %v1156 = vunpack.c.l.b16 %v316
        %v1157 = vunpack.c.l.b16 %v317
        %v1158 = vunpack.c.l.b16 %v318
        %v1159 = vunpack.c.l.b16 %v319
        %v1160 = vunpack.c.l.b16 %v320
        %v1161 = vunpack.c.l.b16 %v321
        %v1162 = vunpack.c.l.b16 %v322
        %v1163 = vunpack.c.l.b16 %v323
        %v1164 = vunpack.c.l.b16 %v324
        %v1165 = vunpack.c.l.b16 %v325
        %v1166 = vunpack.c.l.b16 %v326
        %v1167 = vunpack.c.l.b16 %v327
        %v1168 = vunpack.c.l.b16 %v328
        %v1169 = vunpack.c.l.b16 %v329
        %v1170 = vunpack.c.l.b16 %v330
        %v1171 = vunpack.c.l.b16 %v331
        %v1172 = vunpack.c.l.b16 %v332
        %v1173 = vunpack.c.l.b16 %v333
        %v1174 = vunpack.c.l.b16 %v334
        %v1175 = vunpack.c.l.b16 %v335
        %v1176 = vunpack.c.l.b16 %v336
        %v1177 = vunpack.c.l.b16 %v337
        %v1178 = vunpack.c.l.b16 %v338
        %v1179 = vunpack.c.l.b16 %v339
        %v1180 = vunpack.c.l.b16 %v340
        %v1181 = vunpack.c.l.b16 %v341
        %v1182 = vunpack.c.l.b16 %v342
        %v1183 = vunpack.c.l.b16 %v343
        %v1184 = vunpack.c.l.b16 %v344
        %v1185 = vunpack.c.l.b16 %v345
        %v1186 = vunpack.c.l.b16 %v346
        %v1187 = vunpack.c.l.b16 %v347
        %v1188 = vunpack.c.l.b16 %v348
        %v1189 = vunpack.c.l.b16 %v349
        %v1190 = vunpack.c.l.b16 %v350
        %v1191 = vunpack.c.l.b16 %v351
        %v1192 = vunpack.c.l.b16 %v352
        %v1193 = vunpack.c.l.b16 %v353
        %v1194 = vunpack.c.l.b16 %v354
        %v1195 = vunpack.c.l.b16 %v355
        %v1196 = vunpack.c.l.b16 %v356
        %v1197 = vunpack.c.l.b16 %v357
        %v1198 = vunpack.c.l.b16 %v358
        %v1199 = vunpack.c.l.b16 %v359
        %v1200 = vunpack.c.l.b16 %v360
        %v1201 = vunpack.c.l.b16 %v361
        %v1202 = vunpack.c.l.b16 %v362
        %v1203 = vunpack.c.l.b16 %v363
        %v1204 = vunpack.c.l.b16 %v364
        %v1205 = vunpack.c.l.b16 %v365
        %v1206 = vunpack.c.l.b16 %v366
        %v1207 = vunpack.c.l.b16 %v367
        %v1208 = vunpack.c.l.b16 %v368
        %v1209 = vunpack.c.l.b16 %v369
        %v1210 = vunpack.c.l.b16 %v370
        %v1211 = vunpack.c.l.b16 %v371
        %v1212 = vunpack.c.l.b16 %v372
        %v1213 = vunpack.c.l.b16 %v373
        %v1214 = vunpack.c.l.b16 %v374
        %v1215 = vunpack.c.l.b16 %v375
        %v1216 = vunpack.c.l.b16 %v376
        %v1217 = vunpack.c.l.b16 %v377
        %v1218 = vunpack.c.l.b16 %v378
        %v1219 = vunpack.c.l.b16 %v379
        %v1220 = vunpack.c.l.b16 %v380
        %v1221 = vunpack.c.l.b16 %v381
        %v1222 = vunpack.c.l.b16 %v382
        %v1223 = vunpack.c.l.b16 %v383
        %v1224 = vunpack.c.l.b16 %v384
        %v1225 = vunpack.c.l.b16 %v385
        %v1226 = vunpack.c.l.b16 %v386
        %v1227 = vunpack.c.l.b16 %v387
        %v1228 = vunpack.c.l.b16 %v388
        %v1229 = vunpack.c.l.b16 %v389
        %v1230 = vunpack.c.l.b16 %v390
        %v1231 = vunpack.c.l.b16 %v391
        %v1232 = vunpack.c.l.b16 %v392
        %v1233 = vunpack.c.l.b16 %v393
        %v1234 = vunpack.c.l.b16 %v394
        %v1235 = vunpack.c.l.b16 %v395
        %v1236 = vunpack.c.l.b16 %v396
        %v1237 = vunpack.c.l.b16 %v397
        %v1238 = vunpack.c.l.b16 %v398
        %v1239 = vunpack.c.l.b16 %v399
        %v1240 = vunpack.c.l.b16 %v400
        %v1241 = vunpack.c.l.b16 %v401
        %v1242 = vunpack.c.l.b16 %v402
        %v1243 = vunpack.c.l.b16 %v403
        %v1244 = vunpack.c.l.b16 %v404
        %v1245 = vunpack.c.l.b16 %v405
        %v1246 = vunpack.c.l.b16 %v406
        %v1247 = vunpack.c.l.b16 %v407
        %v1248 = vunpack.c.l.b16 %v408
        %v1249 = vunpack.c.l.b16 %v409
        %v1250 = vunpack.c.l.b16 %v410
        %v1251 = vunpack.c.l.b16 %v411
        %v1252 = vunpack.c.l.b16 %v412
        %v1253 = vunpack.c.l.b16 %v413
        %v1254 = vunpack.c.l.b16 %v414
        %v1255 = vunpack.c.l.b16 %v415
        %v1256 = vunpack.c.l.b16 %v416
        %v1257 = vunpack.c.l.b16 %v417
        %v1258 = vunpack.c.l.b16 %v418
        %v1259 = vunpack.c.l.b16 %v419
        %v1260 = vunpack.c.l.b16 %v420
        %v1261 = vunpack.c.l.b16 %v421
        %v1262 = vunpack.c.l.b16 %v422
        %v1263 = vunpack.c.l.b16 %v423
        %v1264 = vunpack.c.l.b16 %v424
        %v1265 = vunpack.c.l.b16 %v425
        %v1266 = vunpack.c.l.b16 %v426
        %v1267 = vunpack.c.l.b16 %v427
        %v1268 = vunpack.c.l.b16 %v428
        %v1269 = vunpack.c.l.b16 %v429
        %v1270 = vunpack.c.l.b16 %v430
        %v1271 = vunpack.c.l.b16 %v431
        %v1272 = vunpack.c.l.b16 %v432
        %v1273 = vunpack.c.l.b16 %v433
        %v1274 = vunpack.c.l.b16 %v434
        %v1275 = vunpack.c.l.b16 %v435
        %v1276 = vunpack.c.l.b16 %v436
        %v1277 = vunpack.c.l.b16 %v437
        %v1278 = vunpack.c.l.b16 %v438
        %v1279 = vunpack.c.l.b16 %v439
        %v1280 = vunpack.c.l.b16 %v440
        %v1281 = vunpack.c.l.b16 %v441
        %v1282 = vunpack.c.l.b16 %v442
        %v1283 = vunpack.c.l.b16 %v443
        %v1284 = vunpack.c.l.b16 %v444
        %v1285 = vunpack.c.l.b16 %v445
        %v1286 = vunpack.c.l.b16 %v446
        %v1287 = vunpack.c.l.b16 %v447
        %v1288 = vunpack.c.l.b16 %v448
        %v1289 = vunpack.c.l.b16 %v449
        %v1290 = vunpack.c.l.b16 %v450
        %v1291 = vunpack.c.l.b16 %v451
        %v1292 = vunpack.c.l.b16 %v452
        %v1293 = vunpack.c.l.b16 %v453
        %v1294 = vunpack.c.l.b16 %v454
        %v1295 = vunpack.c.l.b16 %v455
        %v1296 = vunpack.c.l.b16 %v456
        %v1297 = vunpack.c.l.b16 %v457
        %v1298 = vunpack.c.l.b16 %v458
        %v1299 = vunpack.c.l.b16 %v459
        %v1300 = vunpack.c.l.b16 %v460
        %v1301 = vunpack.c.l.b16 %v461
        %v1302 = vunpack.c.l.b16 %v462
        %v1303 = vunpack.c.l.b16 %v463
        %v1304 = vunpack.c.l.b16 %v464
        %v1305 = vunpack.c.l.b16 %v465
        %v1306 = vunpack.c.l.b16 %v466
        %v1307 = vunpack.c.l.b16 %v467
        %v1308 = vunpack.c.l.b16 %v468
        %v1309 = vunpack.c.l.b16 %v469
        %v1310 = vunpack.c.l.b16 %v470
        %v1311 = vunpack.c.l.b16 %v471
        %v1312 = vunpack.c.l.b16 %v472
        %v1313 = vunpack.c.l.b16 %v473
        %v1314 = vunpack.c.l.b16 %v474
        %v1315 = vunpack.c.l.b16 %v475
        %v1316 = vunpack.c.l.b16 %v476
        %v1317 = vunpack.c.l.b16 %v477
        %v1318 = vunpack.c.l.b16 %v478
        %v1319 = vunpack.c.l.b16 %v479
        %v1320 = vunpack.c.l.b16 %v480
        %v1321 = vunpack.c.l.b16 %v481
        %v1322 = vunpack.c.l.b16 %v482
        %v1323 = vunpack.c.l.b16 %v483
        %v1324 = vunpack.c.l.b16 %v484
        %v1325 = vunpack.c.l.b16 %v485
        %v1326 = vunpack.c.l.b16 %v486
        %v1327 = vunpack.c.l.b16 %v487
        %v1328 = vunpack.c.l.b16 %v488
        %v1329 = vunpack.c.l.b16 %v489
        %v1330 = vunpack.c.l.b16 %v490
        %v1331 = vunpack.c.l.b16 %v491
        %v1332 = vunpack.c.l.b16 %v492
        %v1333 = vunpack.c.l.b16 %v493
        %v1334 = vunpack.c.l.b16 %v494
        %v1335 = vunpack.c.l.b16 %v495
        %v1336 = vunpack.c.l.b16 %v496
        %v1337 = vunpack.c.l.b16 %v497
        %v1338 = vunpack.c.l.b16 %v498
        %v1339 = vunpack.c.l.b16 %v499
        %v1340 = vunpack.c.l.b16 %v500
        %v1341 = vunpack.c.l.b16 %v501
        %v1342 = vunpack.c.l.b16 %v502
        %v1343 = vunpack.c.l.b16 %v503
        %v1344 = vunpack.c.l.b16 %v504
        %v1345 = vunpack.c.l.b16 %v505
        %v1346 = vunpack.c.l.b16 %v506
        %v1347 = vunpack.c.l.b16 %v507
        %v1348 = vunpack.c.l.b16 %v508
        %v1349 = vunpack.c.l.b16 %v509
        %v1350 = vunpack.c.l.b16 %v510
        %v1351 = vunpack.c.l.b16 %v511
        %v1352 = vunpack.c.l.b16 %v512
        %v1353 = vunpack.c.l.b16 %v513
        %v1354 = vunpack.c.l.b16 %v514
        %v1355 = vunpack.c.l.b16 %v515
        %v1356 = vunpack.c.l.b16 %v516
        %v1357 = vunpack.c.l.b16 %v517
        %v1358 = vunpack.c.l.b16 %v518
        %v1359 = vunpack.c.l.b16 %v519
        %v1360 = vunpack.c.l.b16 %v520
        %v1361 = vunpack.c.l.b16 %v521
        %v1362 = vunpack.c.l.b16 %v522
        %v1363 = vunpack.c.l.b16 %v523
        %v1364 = vunpack.c.l.b16 %v524
        %v1365 = vunpack.c.l.b16 %v525
        %v1366 = vunpack.c.l.b16 %v526
        %v1367 = vunpack.c.l.b16 %v527
        %v1368 = vunpack.c.l.b16 %v528
        %v1369 = vunpack.c.l.b16 %v529
        %v1370 = vunpack.c.l.b16 %v530
        %v1371 = vunpack.c.l.b16 %v531
        %v1372 = vunpack.c.l.b16 %v532
        %v1373 = vunpack.c.l.b16 %v533
        %v1374 = vunpack.c.l.b16 %v534
        %v1375 = vunpack.c.l.b16 %v535
        %v1376 = vunpack.c.l.b16 %v536
        %v1377 = vunpack.c.l.b16 %v537
        %v1378 = vunpack.c.l.b16 %v538
        %v1379 = vunpack.c.l.b16 %v539
        %v1380 = vunpack.c.l.b16 %v540
        %v1381 = vunpack.c.l.b16 %v541
        %v1382 = vunpack.c.l.b16 %v542
        %v1383 = vunpack.c.l.b16 %v543
        %v1384 = vunpack.c.l.b16 %v544
        %v1385 = vunpack.c.l.b16 %v545
        %v1386 = vunpack.c.l.b16 %v546
        %v1387 = vunpack.c.l.b16 %v547
        %v1388 = vunpack.c.l.b16 %v548
        %v1389 = vunpack.c.l.b16 %v549
        %v1390 = vunpack.c.l.b16 %v550
        %v1391 = vunpack.c.l.b16 %v551
        %v1392 = vunpack.c.l.b16 %v552
        %v1393 = vunpack.c.l.b16 %v553
        %v1394 = vunpack.c.l.b16 %v554
        %v1395 = vunpack.c.l.b16 %v555
        %v1396 = vunpack.c.l.b16 %v556
        %v1397 = vunpack.c.l.b16 %v557
        %v1398 = vunpack.c.l.b16 %v558
        %v1399 = vunpack.c.l.b16 %v559
        %v1400 = vunpack.c.l.b16 %v560
        %v1401 = vunpack.c.l.b16 %v561
        %v1402 = vunpack.c.l.b16 %v562
        %v1403 = vunpack.c.l.b16 %v563
        %v1404 = vunpack.c.l.b16 %v564
        %v1405 = vunpack.c.l.b16 %v565
        %v1406 = vunpack.c.l.b16 %v566
        %v1407 = vunpack.c.l.b16 %v567
        %v1408 = vunpack.c.l.b16 %v568
        %v1409 = vunpack.c.l.b16 %v569
        %v1410 = vunpack.c.l.b16 %v570
        %v1411 = vunpack.c.l.b16 %v571
        %v1412 = vunpack.c.l.b16 %v572
        %v1413 = vunpack.c.l.b16 %v573
        %v1414 = vunpack.c.l.b16 %v574
        %v1415 = vunpack.c.l.b16 %v575
        %v1416 = vunpack.c.l.b16 %v576
        %v1417 = vunpack.c.l.b16 %v577
        %v1418 = vunpack.c.l.b16 %v578
        %v1419 = vunpack.c.l.b16 %v579
        %v1420 = vunpack.c.l.b16 %v580
        %v1421 = vunpack.c.l.b16 %v581
        %v1422 = vunpack.c.l.b16 %v582
        %v1423 = vunpack.c.l.b16 %v583
        %v1424 = vunpack.c.l.b16 %v584
        %v1425 = vunpack.c.l.b16 %v585
        %v1426 = vunpack.c.l.b16 %v586
        %v1427 = vunpack.c.l.b16 %v587
        %v1428 = vunpack.c.l.b16 %v588
        %v1429 = vunpack.c.l.b16 %v589
        %v1430 = vunpack.c.l.b16 %v590
        %v1431 = vunpack.c.l.b16 %v591
        %v1432 = vunpack.c.l.b16 %v592
        %v1433 = vunpack.c.l.b16 %v593
        %v1434 = vunpack.c.l.b16 %v594
        %v1435 = vunpack.c.l.b16 %v595
        %v1436 = vunpack.c.l.b16 %v596
        %v1437 = vunpack.c.l.b16 %v597
        %v1438 = vunpack.c.l.b16 %v598
        %v1439 = vunpack.c.l.b16 %v599
        %v1440 = vunpack.c.l.b16 %v600
        %v1441 = vunpack.c.l.b16 %v601
        %v1442 = vunpack.c.l.b16 %v602
        %v1443 = vunpack.c.l.b16 %v603
        %v1444 = vunpack.c.l.b16 %v604
        %v1445 = vunpack.c.l.b16 %v605
        %v1446 = vunpack.c.l.b16 %v606
        %v1447 = vunpack.c.l.b16 %v607
        %v1448 = vunpack.c.l.b16 %v608
        %v1449 = vunpack.c.l.b16 %v609
        %v1450 = vpack.c.b16 %v1131, %v1130
        %v1451 = vpack.c.b16 %v1133, %v1132
        %v1452 = vpack.c.b16 %v1135, %v1134
        %v1453 = vpack.c.b16 %v1137, %v1136
        %v1454 = vpack.c.b16 %v1139, %v1138
        %v1455 = vpack.c.b16 %v1141, %v1140
        %v1456 = vpack.c.b16 %v1143, %v1142
        %v1457 = vpack.c.b16 %v1145, %v1144
        %v1458 = vpack.c.b16 %v1147, %v1146
        %v1459 = vpack.c.b16 %v1149, %v1148
        %v1460 = vpack.c.b16 %v1151, %v1150
        %v1461 = vpack.c.b16 %v1153, %v1152
        %v1462 = vpack.c.b16 %v1155, %v1154
        %v1463 = vpack.c.b16 %v1157, %v1156
        %v1464 = vpack.c.b16 %v1159, %v1158
        %v1465 = vpack.c.b16 %v1161, %v1160
        %v1466 = vpack.c.b16 %v1163, %v1162
        %v1467 = vpack.c.b16 %v1165, %v1164
        %v1468 = vpack.c.b16 %v1167, %v1166
        %v1469 = vpack.c.b16 %v1169, %v1168
        %v1470 = vpack.c.b16 %v1171, %v1170
        %v1471 = vpack.c.b16 %v1173, %v1172
        %v1472 = vpack.c.b16 %v1175, %v1174
        %v1473 = vpack.c.b16 %v1177, %v1176
        %v1474 = vpack.c.b16 %v1179, %v1178
        %v1475 = vpack.c.b16 %v1181, %v1180
        %v1476 = vpack.c.b16 %v1183, %v1182
        %v1477 = vpack.c.b16 %v1185, %v1184
        %v1478 = vpack.c.b16 %v1187, %v1186
        %v1479 = vpack.c.b16 %v1189, %v1188
        %v1480 = vpack.c.b16 %v1191, %v1190
        %v1481 = vpack.c.b16 %v1193, %v1192
        %v1482 = vpack.c.b16 %v1195, %v1194
        %v1483 = vpack.c.b16 %v1197, %v1196
        %v1484 = vpack.c.b16 %v1199, %v1198
        %v1485 = vpack.c.b16 %v1201, %v1200
        %v1486 = vpack.c.b16 %v1203, %v1202
        %v1487 = vpack.c.b16 %v1205, %v1204
        %v1488 = vpack.c.b16 %v1207, %v1206
        %v1489 = vpack.c.b16 %v1209, %v1208
        %v1490 = vpack.c.b16 %v1211, %v1210
        %v1491 = vpack.c.b16 %v1213, %v1212
        %v1492 = vpack.c.b16 %v1215, %v1214
        %v1493 = vpack.c.b16 %v1217, %v1216
        %v1494 = vpack.c.b16 %v1219, %v1218
        %v1495 = vpack.c.b16 %v1221, %v1220
        %v1496 = vpack.c.b16 %v1223, %v1222
        %v1497 = vpack.c.b16 %v1225, %v1224
        %v1498 = vpack.c.b16 %v1227, %v1226
        %v1499 = vpack.c.b16 %v1229, %v1228
        %v1500 = vpack.c.b16 %v1231, %v1230
        %v1501 = vpack.c.b16 %v1233, %v1232
        %v1502 = vpack.c.b16 %v1235, %v1234
        %v1503 = vpack.c.b16 %v1237, %v1236
        %v1504 = vpack.c.b16 %v1239, %v1238
        %v1505 = vpack.c.b16 %v1241, %v1240
        %v1506 = vpack.c.b16 %v1243, %v1242
        %v1507 = vpack.c.b16 %v1245, %v1244
        %v1508 = vpack.c.b16 %v1247, %v1246
        %v1509 = vpack.c.b16 %v1249, %v1248
        %v1510 = vpack.c.b16 %v1251, %v1250
        %v1511 = vpack.c.b16 %v1253, %v1252
        %v1512 = vpack.c.b16 %v1255, %v1254
        %v1513 = vpack.c.b16 %v1257, %v1256
        %v1514 = vpack.c.b16 %v1259, %v1258
        %v1515 = vpack.c.b16 %v1261, %v1260
        %v1516 = vpack.c.b16 %v1263, %v1262
        %v1517 = vpack.c.b16 %v1265, %v1264
        %v1518 = vpack.c.b16 %v1267, %v1266
        %v1519 = vpack.c.b16 %v1269, %v1268
        %v1520 = vpack.c.b16 %v1271, %v1270
        %v1521 = vpack.c.b16 %v1273, %v1272
        %v1522 = vpack.c.b16 %v1275, %v1274
        %v1523 = vpack.c.b16 %v1277, %v1276
        %v1524 = vpack.c.b16 %v1279, %v1278
        %v1525 = vpack.c.b16 %v1281, %v1280
        %v1526 = vpack.c.b16 %v1283, %v1282
        %v1527 = vpack.c.b16 %v1285, %v1284
        %v1528 = vpack.c.b16 %v1287, %v1286
        %v1529 = vpack.c.b16 %v1289, %v1288
        %v1530 = vpack.c.b16 %v1291, %v1290
        %v1531 = vpack.c.b16 %v1293, %v1292
        %v1532 = vpack.c.b16 %v1295, %v1294
        %v1533 = vpack.c.b16 %v1297, %v1296
        %v1534 = vpack.c.b16 %v1299, %v1298
        %v1535 = vpack.c.b16 %v1301, %v1300
        %v1536 = vpack.c.b16 %v1303, %v1302
        %v1537 = vpack.c.b16 %v1305, %v1304
        %v1538 = vpack.c.b16 %v1307, %v1306
        %v1539 = vpack.c.b16 %v1309, %v1308
        %v1540 = vpack.c.b16 %v1311, %v1310
        %v1541 = vpack.c.b16 %v1313, %v1312
        %v1542 = vpack.c.b16 %v1315, %v1314
        %v1543 = vpack.c.b16 %v1317, %v1316
        %v1544 = vpack.c.b16 %v1319, %v1318
        %v1545 = vpack.c.b16 %v1321, %v1320
        %v1546 = vpack.c.b16 %v1323, %v1322
        %v1547 = vpack.c.b16 %v1325, %v1324
        %v1548 = vpack.c.b16 %v1327, %v1326
        %v1549 = vpack.c.b16 %v1329, %v1328
        %v1550 = vpack.c.b16 %v1331, %v1330
        %v1551 = vpack.c.b16 %v1333, %v1332
        %v1552 = vpack.c.b16 %v1335, %v1334
        %v1553 = vpack.c.b16 %v1337, %v1336
        %v1554 = vpack.c.b16 %v1339, %v1338
        %v1555 = vpack.c.b16 %v1341, %v1340
        %v1556 = vpack.c.b16 %v1343, %v1342
        %v1557 = vpack.c.b16 %v1345, %v1344
        %v1558 = vpack.c.b16 %v1347, %v1346
        %v1559 = vpack.c.b16 %v1349, %v1348
        %v1560 = vpack.c.b16 %v1351, %v1350
        %v1561 = vpack.c.b16 %v1353, %v1352
        %v1562 = vpack.c.b16 %v1355, %v1354
        %v1563 = vpack.c.b16 %v1357, %v1356
        %v1564 = vpack.c.b16 %v1359, %v1358
        %v1565 = vpack.c.b16 %v1361, %v1360
        %v1566 = vpack.c.b16 %v1363, %v1362
        %v1567 = vpack.c.b16 %v1365, %v1364
        %v1568 = vpack.c.b16 %v1367, %v1366
        %v1569 = vpack.c.b16 %v1369, %v1368
        %v1570 = vpack.c.b16 %v1371, %v1370
        %v1571 = vpack.c.b16 %v1373, %v1372
        %v1572 = vpack.c.b16 %v1375, %v1374
        %v1573 = vpack.c.b16 %v1377, %v1376
        %v1574 = vpack.c.b16 %v1379, %v1378
        %v1575 = vpack.c.b16 %v1381, %v1380
        %v1576 = vpack.c.b16 %v1383, %v1382
        %v1577 = vpack.c.b16 %v1385, %v1384
        %v1578 = vpack.c.b16 %v1387, %v1386
        %v1579 = vpack.c.b16 %v1389, %v1388
        %v1580 = vpack.c.b16 %v1391, %v1390
        %v1581 = vpack.c.b16 %v1393, %v1392
        %v1582 = vpack.c.b16 %v1395, %v1394
        %v1583 = vpack.c.b16 %v1397, %v1396
        %v1584 = vpack.c.b16 %v1399, %v1398
        %v1585 = vpack.c.b16 %v1401, %v1400
        %v1586 = vpack.c.b16 %v1403, %v1402
        %v1587 = vpack.c.b16 %v1405, %v1404
        %v1588 = vpack.c.b16 %v1407, %v1406
        %v1589 = vpack.c.b16 %v1409, %v1408
        %v1590 = vpack.c.b16 %v1411, %v1410
        %v1591 = vpack.c.b16 %v1413, %v1412
        %v1592 = vpack.c.b16 %v1415, %v1414
        %v1593 = vpack.c.b16 %v1417, %v1416
        %v1594 = vpack.c.b16 %v1419, %v1418
        %v1595 = vpack.c.b16 %v1421, %v1420
        %v1596 = vpack.c.b16 %v1423, %v1422
        %v1597 = vpack.c.b16 %v1425, %v1424
        %v1598 = vpack.c.b16 %v1427, %v1426
        %v1599 = vpack.c.b16 %v1429, %v1428
        %v1600 = vpack.c.b16 %v1431, %v1430
        %v1601 = vpack.c.b16 %v1433, %v1432
        %v1602 = vpack.c.b16 %v1435, %v1434
        %v1603 = vpack.c.b16 %v1437, %v1436
        %v1604 = vpack.c.b16 %v1439, %v1438
        %v1605 = vpack.c.b16 %v1441, %v1440
        %v1606 = vpack.c.b16 %v1443, %v1442
        %v1607 = vpack.c.b16 %v1445, %v1444
        %v1608 = vpack.c.b16 %v1447, %v1446
        %v1609 = vpack.c.b16 %v1449, %v1448
        %1770 = vmatprep.subr.bf16.mxu0 0
        %1771 = vmatpush1.bf16.msra.mxu0 %v1450
        %1772 = vmatprep.subr.bf16.mxu0 0
        %1773 = vmatpush1.bf16.msra.mxu0 %v1451
        %1774 = vmatprep.subr.bf16.mxu0 0
        %1775 = vmatpush1.bf16.msra.mxu0 %v1452
        %1776 = vmatprep.subr.bf16.mxu0 0
        %1777 = vmatpush1.bf16.msra.mxu0 %v1453
        %1778 = vmatprep.subr.bf16.mxu0 0
        %1779 = vmatpush1.bf16.msra.mxu0 %v1454
        %1780 = vmatprep.subr.bf16.mxu0 0
        %1781 = vmatpush1.bf16.msra.mxu0 %v1455
        %1782 = vmatprep.subr.bf16.mxu0 0
        %1783 = vmatpush1.bf16.msra.mxu0 %v1456
        %1784 = vmatprep.subr.bf16.mxu0 0
        %1785 = vmatpush1.bf16.msra.mxu0 %v1457
        %1786 = vmatprep.subr.bf16.mxu0 0
        %1787 = vmatpush1.bf16.msra.mxu0 %v1458
        %1788 = vmatprep.subr.bf16.mxu0 0
        %1789 = vmatpush1.bf16.msra.mxu0 %v1459
        %1790 = vmatprep.subr.bf16.mxu0 0
        %1791 = vmatpush1.bf16.msra.mxu0 %v1460
        %1792 = vmatprep.subr.bf16.mxu0 0
        %1793 = vmatpush1.bf16.msra.mxu0 %v1461
        %1794 = vmatprep.subr.bf16.mxu0 0
        %1795 = vmatpush1.bf16.msra.mxu0 %v1462
        %1796 = vmatprep.subr.bf16.mxu0 0
        %1797 = vmatpush1.bf16.msra.mxu0 %v1463
        %1798 = vmatprep.subr.bf16.mxu0 0
        %1799 = vmatpush1.bf16.msra.mxu0 %v1464
        %1800 = vmatprep.subr.bf16.mxu0 0
        %1801 = vmatpush1.bf16.msra.mxu0 %v1465
        %1802 = vmatprep.mubr.bf16.mxu0 %v731
        %1803 = vmatmul.mubr.bf16.gmra.mrb[0].mxu0 %v730
        %v1804 = vpop.f32.mrb[0].mxu0
        %v1805 = vadd.f32 0.0, %v1804
        %v1806 = vpop.f32.mrb[0].mxu0
        %v1807 = vpop.f32.mrb[0].mxu0
        %v1808 = vadd.f32 0.0, %v1807
        %v1809 = vpop.f32.mrb[0].mxu0
        %1810 = vmatprep.mubr.bf16.mxu0 %v751
        %1811 = vmatmul.mubr.bf16.gmra.mrb[0].mxu0 %v750
        %v1812 = vpop.f32.mrb[0].mxu0
        %v1813 = vadd.f32 0.0, %v1812
        %v1814 = vpop.f32.mrb[0].mxu0
        %v1815 = vpop.f32.mrb[0].mxu0
        %v1816 = vadd.f32 0.0, %v1815
        %v1817 = vpop.f32.mrb[0].mxu0
        %1818 = vdwg.mxu0
        %1819 = vmatprep.subr.bf16.mxu0 0
        %1820 = vmatpush1.bf16.msra.mxu0 %v1466
        %1821 = vmatprep.subr.bf16.mxu0 0
        %1822 = vmatpush1.bf16.msra.mxu0 %v1467
        %1823 = vmatprep.subr.bf16.mxu0 0
        %1824 = vmatpush1.bf16.msra.mxu0 %v1468
        %1825 = vmatprep.subr.bf16.mxu0 0
        %1826 = vmatpush1.bf16.msra.mxu0 %v1469
        %1827 = vmatprep.subr.bf16.mxu0 0
        %1828 = vmatpush1.bf16.msra.mxu0 %v1470
        %1829 = vmatprep.subr.bf16.mxu0 0
        %1830 = vmatpush1.bf16.msra.mxu0 %v1471
        %1831 = vmatprep.subr.bf16.mxu0 0
        %1832 = vmatpush1.bf16.msra.mxu0 %v1472
        %1833 = vmatprep.subr.bf16.mxu0 0
        %1834 = vmatpush1.bf16.msra.mxu0 %v1473
        %1835 = vmatprep.subr.bf16.mxu0 0
        %1836 = vmatpush1.bf16.msra.mxu0 %v1474
        %1837 = vmatprep.subr.bf16.mxu0 0
        %1838 = vmatpush1.bf16.msra.mxu0 %v1475
        %1839 = vmatprep.subr.bf16.mxu0 0
        %1840 = vmatpush1.bf16.msra.mxu0 %v1476
        %1841 = vmatprep.subr.bf16.mxu0 0
        %1842 = vmatpush1.bf16.msra.mxu0 %v1477
        %1843 = vmatprep.subr.bf16.mxu0 0
        %1844 = vmatpush1.bf16.msra.mxu0 %v1478
        %1845 = vmatprep.subr.bf16.mxu0 0
        %1846 = vmatpush1.bf16.msra.mxu0 %v1479
        %1847 = vmatprep.subr.bf16.mxu0 0
        %1848 = vmatpush1.bf16.msra.mxu0 %v1480
        %1849 = vmatprep.subr.bf16.mxu0 0
        %1850 = vmatpush1.bf16.msra.mxu0 %v1481
        %1851 = vmatprep.mubr.bf16.mxu0 %v733
        %1852 = vmatmul.mubr.bf16.gmra.mrb[0].mxu0 %v732
        %v1853 = vpop.f32.mrb[0].mxu0
        %v1854 = vadd.f32 %v1805, %v1853
        %v1855 = vpop.f32.mrb[0].mxu0
        %v1856 = vpop.f32.mrb[0].mxu0
        %v1857 = vadd.f32 %v1808, %v1856
        %v1858 = vpop.f32.mrb[0].mxu0
        %1859 = vmatprep.mubr.bf16.mxu0 %v753
        %1860 = vmatmul.mubr.bf16.gmra.mrb[0].mxu0 %v752
        %v1861 = vpop.f32.mrb[0].mxu0
        %v1862 = vadd.f32 %v1813, %v1861
        %v1863 = vpop.f32.mrb[0].mxu0
        %v1864 = vpop.f32.mrb[0].mxu0
        %v1865 = vadd.f32 %v1816, %v1864
        %v1866 = vpop.f32.mrb[0].mxu0
        %1867 = vdwg.mxu0
        %1868 = vmatprep.subr.bf16.mxu0 0
        %1869 = vmatpush1.bf16.msra.mxu0 %v1482
        %1870 = vmatprep.subr.bf16.mxu0 0
        %1871 = vmatpush1.bf16.msra.mxu0 %v1483
        %1872 = vmatprep.subr.bf16.mxu0 0
        %1873 = vmatpush1.bf16.msra.mxu0 %v1484
        %1874 = vmatprep.subr.bf16.mxu0 0
        %1875 = vmatpush1.bf16.msra.mxu0 %v1485
        %1876 = vmatprep.subr.bf16.mxu0 0
        %1877 = vmatpush1.bf16.msra.mxu0 %v1486
        %1878 = vmatprep.subr.bf16.mxu0 0
        %1879 = vmatpush1.bf16.msra.mxu0 %v1487
        %1880 = vmatprep.subr.bf16.mxu0 0
        %1881 = vmatpush1.bf16.msra.mxu0 %v1488
        %1882 = vmatprep.subr.bf16.mxu0 0
        %1883 = vmatpush1.bf16.msra.mxu0 %v1489
        %1884 = vmatprep.subr.bf16.mxu0 0
        %1885 = vmatpush1.bf16.msra.mxu0 %v1490
        %1886 = vmatprep.subr.bf16.mxu0 0
        %1887 = vmatpush1.bf16.msra.mxu0 %v1491
        %1888 = vmatprep.subr.bf16.mxu0 0
        %1889 = vmatpush1.bf16.msra.mxu0 %v1492
        %1890 = vmatprep.subr.bf16.mxu0 0
        %1891 = vmatpush1.bf16.msra.mxu0 %v1493
        %1892 = vmatprep.subr.bf16.mxu0 0
        %1893 = vmatpush1.bf16.msra.mxu0 %v1494
        %1894 = vmatprep.subr.bf16.mxu0 0
        %1895 = vmatpush1.bf16.msra.mxu0 %v1495
        %1896 = vmatprep.subr.bf16.mxu0 0
        %1897 = vmatpush1.bf16.msra.mxu0 %v1496
        %1898 = vmatprep.subr.bf16.mxu0 0
        %1899 = vmatpush1.bf16.msra.mxu0 %v1497
        %1900 = vmatprep.mubr.bf16.mxu0 %v735
        %1901 = vmatmul.mubr.bf16.gmra.mrb[0].mxu0 %v734
        %v1902 = vpop.f32.mrb[0].mxu0
        %v1903 = vadd.f32 %v1854, %v1902
        %v1904 = vpop.f32.mrb[0].mxu0
        %v1905 = vpop.f32.mrb[0].mxu0
        %v1906 = vadd.f32 %v1857, %v1905
        %v1907 = vpop.f32.mrb[0].mxu0
        %1908 = vmatprep.mubr.bf16.mxu0 %v755
        %1909 = vmatmul.mubr.bf16.gmra.mrb[0].mxu0 %v754
        %v1910 = vpop.f32.mrb[0].mxu0
        %v1911 = vadd.f32 %v1862, %v1910
        %v1912 = vpop.f32.mrb[0].mxu0
        %v1913 = vpop.f32.mrb[0].mxu0
        %v1914 = vadd.f32 %v1865, %v1913
        %v1915 = vpop.f32.mrb[0].mxu0
        %1916 = vdwg.mxu0
        %1917 = vmatprep.subr.bf16.mxu0 0
        %1918 = vmatpush1.bf16.msra.mxu0 %v1498
        %1919 = vmatprep.subr.bf16.mxu0 0
        %1920 = vmatpush1.bf16.msra.mxu0 %v1499
        %1921 = vmatprep.subr.bf16.mxu0 0
        %1922 = vmatpush1.bf16.msra.mxu0 %v1500
        %1923 = vmatprep.subr.bf16.mxu0 0
        %1924 = vmatpush1.bf16.msra.mxu0 %v1501
        %1925 = vmatprep.subr.bf16.mxu0 0
        %1926 = vmatpush1.bf16.msra.mxu0 %v1502
        %1927 = vmatprep.subr.bf16.mxu0 0
        %1928 = vmatpush1.bf16.msra.mxu0 %v1503
        %1929 = vmatprep.subr.bf16.mxu0 0
        %1930 = vmatpush1.bf16.msra.mxu0 %v1504
        %1931 = vmatprep.subr.bf16.mxu0 0
        %1932 = vmatpush1.bf16.msra.mxu0 %v1505
        %1933 = vmatprep.subr.bf16.mxu0 0
        %1934 = vmatpush1.bf16.msra.mxu0 %v1506
        %1935 = vmatprep.subr.bf16.mxu0 0
        %1936 = vmatpush1.bf16.msra.mxu0 %v1507
        %1937 = vmatprep.subr.bf16.mxu0 0
        %1938 = vmatpush1.bf16.msra.mxu0 %v1508
        %1939 = vmatprep.subr.bf16.mxu0 0
        %1940 = vmatpush1.bf16.msra.mxu0 %v1509
        %1941 = vmatprep.subr.bf16.mxu0 0
        %1942 = vmatpush1.bf16.msra.mxu0 %v1510
        %1943 = vmatprep.subr.bf16.mxu0 0
        %1944 = vmatpush1.bf16.msra.mxu0 %v1511
        %1945 = vmatprep.subr.bf16.mxu0 0
        %1946 = vmatpush1.bf16.msra.mxu0 %v1512
        %1947 = vmatprep.subr.bf16.mxu0 0
        %1948 = vmatpush1.bf16.msra.mxu0 %v1513
        %1949 = vmatprep.mubr.bf16.mxu0 %v737
        %1950 = vmatmul.mubr.bf16.gmra.mrb[0].mxu0 %v736
        %v1951 = vpop.f32.mrb[0].mxu0
        %v1952 = vadd.f32 %v1903, %v1951
        %v1953 = vpop.f32.mrb[0].mxu0
        %v1954 = vpop.f32.mrb[0].mxu0
        %v1955 = vadd.f32 %v1906, %v1954
        %v1956 = vpop.f32.mrb[0].mxu0
        %1957 = vmatprep.mubr.bf16.mxu0 %v757
        %1958 = vmatmul.mubr.bf16.gmra.mrb[0].mxu0 %v756
        %v1959 = vpop.f32.mrb[0].mxu0
        %v1960 = vadd.f32 %v1911, %v1959
        %v1961 = vpop.f32.mrb[0].mxu0
        %v1962 = vpop.f32.mrb[0].mxu0
        %v1963 = vadd.f32 %v1914, %v1962
        %v1964 = vpop.f32.mrb[0].mxu0
        %1965 = vdwg.mxu0
        %1966 = vmatprep.subr.bf16.mxu0 0
        %1967 = vmatpush1.bf16.msra.mxu0 %v1514
        %1968 = vmatprep.subr.bf16.mxu0 0
        %1969 = vmatpush1.bf16.msra.mxu0 %v1515
        %1970 = vmatprep.subr.bf16.mxu0 0
        %1971 = vmatpush1.bf16.msra.mxu0 %v1516
        %1972 = vmatprep.subr.bf16.mxu0 0
        %1973 = vmatpush1.bf16.msra.mxu0 %v1517
        %1974 = vmatprep.subr.bf16.mxu0 0
        %1975 = vmatpush1.bf16.msra.mxu0 %v1518
        %1976 = vmatprep.subr.bf16.mxu0 0
        %1977 = vmatpush1.bf16.msra.mxu0 %v1519
        %1978 = vmatprep.subr.bf16.mxu0 0
        %1979 = vmatpush1.bf16.msra.mxu0 %v1520
        %1980 = vmatprep.subr.bf16.mxu0 0
        %1981 = vmatpush1.bf16.msra.mxu0 %v1521
        %1982 = vmatprep.subr.bf16.mxu0 0
        %1983 = vmatpush1.bf16.msra.mxu0 %v1522
        %1984 = vmatprep.subr.bf16.mxu0 0
        %1985 = vmatpush1.bf16.msra.mxu0 %v1523
        %1986 = vmatprep.subr.bf16.mxu0 0
        %1987 = vmatpush1.bf16.msra.mxu0 %v1524
        %1988 = vmatprep.subr.bf16.mxu0 0
        %1989 = vmatpush1.bf16.msra.mxu0 %v1525
        %1990 = vmatprep.subr.bf16.mxu0 0
        %1991 = vmatpush1.bf16.msra.mxu0 %v1526
        %1992 = vmatprep.subr.bf16.mxu0 0
        %1993 = vmatpush1.bf16.msra.mxu0 %v1527
        %1994 = vmatprep.subr.bf16.mxu0 0
        %1995 = vmatpush1.bf16.msra.mxu0 %v1528
        %1996 = vmatprep.subr.bf16.mxu0 0
        %1997 = vmatpush1.bf16.msra.mxu0 %v1529
        %1998 = vmatprep.mubr.bf16.mxu0 %v739
        %1999 = vmatmul.mubr.bf16.gmra.mrb[0].mxu0 %v738
        %v2000 = vpop.f32.mrb[0].mxu0
        %v2001 = vadd.f32 %v1952, %v2000
        %v2002 = vpop.f32.mrb[0].mxu0
        %v2003 = vpop.f32.mrb[0].mxu0
        %v2004 = vadd.f32 %v1955, %v2003
        %v2005 = vpop.f32.mrb[0].mxu0
        %2006 = vmatprep.mubr.bf16.mxu0 %v759
        %2007 = vmatmul.mubr.bf16.gmra.mrb[0].mxu0 %v758
        %v2008 = vpop.f32.mrb[0].mxu0
        %v2009 = vadd.f32 %v1960, %v2008
        %v2010 = vpop.f32.mrb[0].mxu0
        %v2011 = vpop.f32.mrb[0].mxu0
        %v2012 = vadd.f32 %v1963, %v2011
        %v2013 = vpop.f32.mrb[0].mxu0
        %2014 = vdwg.mxu0
        %2015 = vmatprep.subr.bf16.mxu0 0
        %2016 = vmatpush1.bf16.msra.mxu0 %v1530
        %2017 = vmatprep.subr.bf16.mxu0 0
        %2018 = vmatpush1.bf16.msra.mxu0 %v1531
        %2019 = vmatprep.subr.bf16.mxu0 0
        %2020 = vmatpush1.bf16.msra.mxu0 %v1532
        %2021 = vmatprep.subr.bf16.mxu0 0
        %2022 = vmatpush1.bf16.msra.mxu0 %v1533
        %2023 = vmatprep.subr.bf16.mxu0 0
        %2024 = vmatpush1.bf16.msra.mxu0 %v1534
        %2025 = vmatprep.subr.bf16.mxu0 0
        %2026 = vmatpush1.bf16.msra.mxu0 %v1535
        %2027 = vmatprep.subr.bf16.mxu0 0
        %2028 = vmatpush1.bf16.msra.mxu0 %v1536
        %2029 = vmatprep.subr.bf16.mxu0 0
        %2030 = vmatpush1.bf16.msra.mxu0 %v1537
        %2031 = vmatprep.subr.bf16.mxu0 0
        %2032 = vmatpush1.bf16.msra.mxu0 %v1538
        %2033 = vmatprep.subr.bf16.mxu0 0
        %2034 = vmatpush1.bf16.msra.mxu0 %v1539
        %2035 = vmatprep.subr.bf16.mxu0 0
        %2036 = vmatpush1.bf16.msra.mxu0 %v1540
        %2037 = vmatprep.subr.bf16.mxu0 0
        %2038 = vmatpush1.bf16.msra.mxu0 %v1541
        %2039 = vmatprep.subr.bf16.mxu0 0
        %2040 = vmatpush1.bf16.msra.mxu0 %v1542
        %2041 = vmatprep.subr.bf16.mxu0 0
        %2042 = vmatpush1.bf16.msra.mxu0 %v1543
        %2043 = vmatprep.subr.bf16.mxu0 0
        %2044 = vmatpush1.bf16.msra.mxu0 %v1544
        %2045 = vmatprep.subr.bf16.mxu0 0
        %2046 = vmatpush1.bf16.msra.mxu0 %v1545
        %2047 = vmatprep.mubr.bf16.mxu0 %v741
        %2048 = vmatmul.mubr.bf16.gmra.mrb[0].mxu0 %v740
        %v2049 = vpop.f32.mrb[0].mxu0
        %v2050 = vadd.f32 %v2001, %v2049
        %v2051 = vpop.f32.mrb[0].mxu0
        %v2052 = vpop.f32.mrb[0].mxu0
        %v2053 = vadd.f32 %v2004, %v2052
        %v2054 = vpop.f32.mrb[0].mxu0
        %2055 = vmatprep.mubr.bf16.mxu0 %v761
        %2056 = vmatmul.mubr.bf16.gmra.mrb[0].mxu0 %v760
        %v2057 = vpop.f32.mrb[0].mxu0
        %v2058 = vadd.f32 %v2009, %v2057
        %v2059 = vpop.f32.mrb[0].mxu0
        %v2060 = vpop.f32.mrb[0].mxu0
        %v2061 = vadd.f32 %v2012, %v2060
        %v2062 = vpop.f32.mrb[0].mxu0
        %2063 = vdwg.mxu0
        %2064 = vmatprep.subr.bf16.mxu0 0
        %2065 = vmatpush1.bf16.msra.mxu0 %v1546
        %2066 = vmatprep.subr.bf16.mxu0 0
        %2067 = vmatpush1.bf16.msra.mxu0 %v1547
        %2068 = vmatprep.subr.bf16.mxu0 0
        %2069 = vmatpush1.bf16.msra.mxu0 %v1548
        %2070 = vmatprep.subr.bf16.mxu0 0
        %2071 = vmatpush1.bf16.msra.mxu0 %v1549
        %2072 = vmatprep.subr.bf16.mxu0 0
        %2073 = vmatpush1.bf16.msra.mxu0 %v1550
        %2074 = vmatprep.subr.bf16.mxu0 0
        %2075 = vmatpush1.bf16.msra.mxu0 %v1551
        %2076 = vmatprep.subr.bf16.mxu0 0
        %2077 = vmatpush1.bf16.msra.mxu0 %v1552
        %2078 = vmatprep.subr.bf16.mxu0 0
        %2079 = vmatpush1.bf16.msra.mxu0 %v1553
        %2080 = vmatprep.subr.bf16.mxu0 0
        %2081 = vmatpush1.bf16.msra.mxu0 %v1554
        %2082 = vmatprep.subr.bf16.mxu0 0
        %2083 = vmatpush1.bf16.msra.mxu0 %v1555
        %2084 = vmatprep.subr.bf16.mxu0 0
        %2085 = vmatpush1.bf16.msra.mxu0 %v1556
        %2086 = vmatprep.subr.bf16.mxu0 0
        %2087 = vmatpush1.bf16.msra.mxu0 %v1557
        %2088 = vmatprep.subr.bf16.mxu0 0
        %2089 = vmatpush1.bf16.msra.mxu0 %v1558
        %2090 = vmatprep.subr.bf16.mxu0 0
        %2091 = vmatpush1.bf16.msra.mxu0 %v1559
        %2092 = vmatprep.subr.bf16.mxu0 0
        %2093 = vmatpush1.bf16.msra.mxu0 %v1560
        %2094 = vmatprep.subr.bf16.mxu0 0
        %2095 = vmatpush1.bf16.msra.mxu0 %v1561
        %2096 = vmatprep.mubr.bf16.mxu0 %v743
        %2097 = vmatmul.mubr.bf16.gmra.mrb[0].mxu0 %v742
        %v2098 = vpop.f32.mrb[0].mxu0
        %v2099 = vadd.f32 %v2050, %v2098
        %v2100 = vpop.f32.mrb[0].mxu0
        %v2101 = vpop.f32.mrb[0].mxu0
        %v2102 = vadd.f32 %v2053, %v2101
        %v2103 = vpop.f32.mrb[0].mxu0
        %2104 = vmatprep.mubr.bf16.mxu0 %v763
        %2105 = vmatmul.mubr.bf16.gmra.mrb[0].mxu0 %v762
        %v2106 = vpop.f32.mrb[0].mxu0
        %v2107 = vadd.f32 %v2058, %v2106
        %v2108 = vpop.f32.mrb[0].mxu0
        %v2109 = vpop.f32.mrb[0].mxu0
        %v2110 = vadd.f32 %v2061, %v2109
        %v2111 = vpop.f32.mrb[0].mxu0
        %2112 = vdwg.mxu0
        %2113 = vmatprep.subr.bf16.mxu0 0
        %2114 = vmatpush1.bf16.msra.mxu0 %v1562
        %2115 = vmatprep.subr.bf16.mxu0 0
        %2116 = vmatpush1.bf16.msra.mxu0 %v1563
        %2117 = vmatprep.subr.bf16.mxu0 0
        %2118 = vmatpush1.bf16.msra.mxu0 %v1564
        %2119 = vmatprep.subr.bf16.mxu0 0
        %2120 = vmatpush1.bf16.msra.mxu0 %v1565
        %2121 = vmatprep.subr.bf16.mxu0 0
        %2122 = vmatpush1.bf16.msra.mxu0 %v1566
        %2123 = vmatprep.subr.bf16.mxu0 0
        %2124 = vmatpush1.bf16.msra.mxu0 %v1567
        %2125 = vmatprep.subr.bf16.mxu0 0
        %2126 = vmatpush1.bf16.msra.mxu0 %v1568
        %2127 = vmatprep.subr.bf16.mxu0 0
        %2128 = vmatpush1.bf16.msra.mxu0 %v1569
        %2129 = vmatprep.subr.bf16.mxu0 0
        %2130 = vmatpush1.bf16.msra.mxu0 %v1570
        %2131 = vmatprep.subr.bf16.mxu0 0
        %2132 = vmatpush1.bf16.msra.mxu0 %v1571
        %2133 = vmatprep.subr.bf16.mxu0 0
        %2134 = vmatpush1.bf16.msra.mxu0 %v1572
        %2135 = vmatprep.subr.bf16.mxu0 0
        %2136 = vmatpush1.bf16.msra.mxu0 %v1573
        %2137 = vmatprep.subr.bf16.mxu0 0
        %2138 = vmatpush1.bf16.msra.mxu0 %v1574
        %2139 = vmatprep.subr.bf16.mxu0 0
        %2140 = vmatpush1.bf16.msra.mxu0 %v1575
        %2141 = vmatprep.subr.bf16.mxu0 0
        %2142 = vmatpush1.bf16.msra.mxu0 %v1576
        %2143 = vmatprep.subr.bf16.mxu0 0
        %2144 = vmatpush1.bf16.msra.mxu0 %v1577
        %2145 = vmatprep.mubr.bf16.mxu0 %v745
        %2146 = vmatmul.mubr.bf16.gmra.mrb[0].mxu0 %v744
        %v2147 = vpop.f32.mrb[0].mxu0
        %v2148 = vadd.f32 %v2099, %v2147
        %v2149 = vpop.f32.mrb[0].mxu0
        %v2150 = vpop.f32.mrb[0].mxu0
        %v2151 = vadd.f32 %v2102, %v2150
        %v2152 = vpop.f32.mrb[0].mxu0
        %2153 = vmatprep.mubr.bf16.mxu0 %v765
        %2154 = vmatmul.mubr.bf16.gmra.mrb[0].mxu0 %v764
        %v2155 = vpop.f32.mrb[0].mxu0
        %v2156 = vadd.f32 %v2107, %v2155
        %v2157 = vpop.f32.mrb[0].mxu0
        %v2158 = vpop.f32.mrb[0].mxu0
        %v2159 = vadd.f32 %v2110, %v2158
        %v2160 = vpop.f32.mrb[0].mxu0
        %2161 = vdwg.mxu0
        %2162 = vmatprep.subr.bf16.mxu0 0
        %2163 = vmatpush1.bf16.msra.mxu0 %v1578
        %2164 = vmatprep.subr.bf16.mxu0 0
        %2165 = vmatpush1.bf16.msra.mxu0 %v1579
        %2166 = vmatprep.subr.bf16.mxu0 0
        %2167 = vmatpush1.bf16.msra.mxu0 %v1580
        %2168 = vmatprep.subr.bf16.mxu0 0
        %2169 = vmatpush1.bf16.msra.mxu0 %v1581
        %2170 = vmatprep.subr.bf16.mxu0 0
        %2171 = vmatpush1.bf16.msra.mxu0 %v1582
        %2172 = vmatprep.subr.bf16.mxu0 0
        %2173 = vmatpush1.bf16.msra.mxu0 %v1583
        %2174 = vmatprep.subr.bf16.mxu0 0
        %2175 = vmatpush1.bf16.msra.mxu0 %v1584
        %2176 = vmatprep.subr.bf16.mxu0 0
        %2177 = vmatpush1.bf16.msra.mxu0 %v1585
        %2178 = vmatprep.subr.bf16.mxu0 0
        %2179 = vmatpush1.bf16.msra.mxu0 %v1586
        %2180 = vmatprep.subr.bf16.mxu0 0
        %2181 = vmatpush1.bf16.msra.mxu0 %v1587
        %2182 = vmatprep.subr.bf16.mxu0 0
        %2183 = vmatpush1.bf16.msra.mxu0 %v1588
        %2184 = vmatprep.subr.bf16.mxu0 0
        %2185 = vmatpush1.bf16.msra.mxu0 %v1589
        %2186 = vmatprep.subr.bf16.mxu0 0
        %2187 = vmatpush1.bf16.msra.mxu0 %v1590
        %2188 = vmatprep.subr.bf16.mxu0 0
        %2189 = vmatpush1.bf16.msra.mxu0 %v1591
        %2190 = vmatprep.subr.bf16.mxu0 0
        %2191 = vmatpush1.bf16.msra.mxu0 %v1592
        %2192 = vmatprep.subr.bf16.mxu0 0
        %2193 = vmatpush1.bf16.msra.mxu0 %v1593
        %2194 = vmatprep.mubr.bf16.mxu0 %v747
        %2195 = vmatmul.mubr.bf16.gmra.mrb[0].mxu0 %v746
        %v2196 = vpop.f32.mrb[0].mxu0
        %v2197 = vadd.f32 %v2148, %v2196
        %v2198 = vpop.f32.mrb[0].mxu0
        %v2199 = vpop.f32.mrb[0].mxu0
        %v2200 = vadd.f32 %v2151, %v2199
        %v2201 = vpop.f32.mrb[0].mxu0
        %2202 = vmatprep.mubr.bf16.mxu0 %v767
        %2203 = vmatmul.mubr.bf16.gmra.mrb[0].mxu0 %v766
        %v2204 = vpop.f32.mrb[0].mxu0
        %v2205 = vadd.f32 %v2156, %v2204
        %v2206 = vpop.f32.mrb[0].mxu0
        %v2207 = vpop.f32.mrb[0].mxu0
        %v2208 = vadd.f32 %v2159, %v2207
        %v2209 = vpop.f32.mrb[0].mxu0
        %2210 = vdwg.mxu0
        %2211 = vmatprep.subr.bf16.mxu0 0
        %2212 = vmatpush1.bf16.msra.mxu0 %v1594
        %2213 = vmatprep.subr.bf16.mxu0 0
        %2214 = vmatpush1.bf16.msra.mxu0 %v1595
        %2215 = vmatprep.subr.bf16.mxu0 0
        %2216 = vmatpush1.bf16.msra.mxu0 %v1596
        %2217 = vmatprep.subr.bf16.mxu0 0
        %2218 = vmatpush1.bf16.msra.mxu0 %v1597
        %2219 = vmatprep.subr.bf16.mxu0 0
        %2220 = vmatpush1.bf16.msra.mxu0 %v1598
        %2221 = vmatprep.subr.bf16.mxu0 0
        %2222 = vmatpush1.bf16.msra.mxu0 %v1599
        %2223 = vmatprep.subr.bf16.mxu0 0
        %2224 = vmatpush1.bf16.msra.mxu0 %v1600
        %2225 = vmatprep.subr.bf16.mxu0 0
        %2226 = vmatpush1.bf16.msra.mxu0 %v1601
        %2227 = vmatprep.subr.bf16.mxu0 0
        %2228 = vmatpush1.bf16.msra.mxu0 %v1602
        %2229 = vmatprep.subr.bf16.mxu0 0
        %2230 = vmatpush1.bf16.msra.mxu0 %v1603
        %2231 = vmatprep.subr.bf16.mxu0 0
        %2232 = vmatpush1.bf16.msra.mxu0 %v1604
        %2233 = vmatprep.subr.bf16.mxu0 0
        %2234 = vmatpush1.bf16.msra.mxu0 %v1605
        %2235 = vmatprep.subr.bf16.mxu0 0
        %2236 = vmatpush1.bf16.msra.mxu0 %v1606
        %2237 = vmatprep.subr.bf16.mxu0 0
        %2238 = vmatpush1.bf16.msra.mxu0 %v1607
        %2239 = vmatprep.subr.bf16.mxu0 0
        %2240 = vmatpush1.bf16.msra.mxu0 %v1608
        %2241 = vmatprep.subr.bf16.mxu0 0
        %2242 = vmatpush1.bf16.msra.mxu0 %v1609
        %2243 = vmatprep.mubr.bf16.mxu0 %v749
        %2244 = vmatmul.mubr.bf16.gmra.mrb[0].mxu0 %v748
        %v2245 = vpop.f32.mrb[0].mxu0
        %v2246 = vadd.f32 %v2197, %v2245
        %v2247 = vpop.f32.mrb[0].mxu0
        %v2248 = vpop.f32.mrb[0].mxu0
        %v2249 = vadd.f32 %v2200, %v2248
        %v2250 = vpop.f32.mrb[0].mxu0
        %2251 = vmatprep.mubr.bf16.mxu0 %v769
        %2252 = vmatmul.mubr.bf16.gmra.mrb[0].mxu0 %v768
        %v2253 = vpop.f32.mrb[0].mxu0
        %v2254 = vadd.f32 %v2205, %v2253
        %v2255 = vpop.f32.mrb[0].mxu0
        %v2256 = vpop.f32.mrb[0].mxu0
        %v2257 = vadd.f32 %v2208, %v2256
        %v2258 = vpop.f32.mrb[0].mxu0
        %2259 = vdwg.mxu0
        %vm2260 = vcmask 162816
        %v2261 = vsel %vm2260, %v2246, -inf
        %2262 = vmax.xlane.f32.xlu0 %v2261
        %v2263 = vpop.xlane.xlu0 %2262
        %v2264 = vsel %vm2260, %v2249, -inf
        %2265 = vmax.xlane.f32.xlu0 %v2264
        %v2266 = vpop.xlane.xlu0 %2265
        %v2267 = vsel %vm2260, %v2254, -inf
        %2268 = vmax.xlane.f32.xlu0 %v2267
        %v2269 = vpop.xlane.xlu0 %2268
        %v2270 = vsel %vm2260, %v2257, -inf
        %2271 = vmax.xlane.f32.xlu0 %v2270
        %v2272 = vpop.xlane.xlu0 %2271
        %v2273 = vsub.f32 %v2246, %v2263
        %v2274 = vsub.f32 %v2249, %v2266
        %v2275 = vsub.f32 %v2254, %v2269
        %v2276 = vsub.f32 %v2257, %v2272
        %v2277 = vmul.f32 %v2273, 1.442695
        %v2278 = vpow.pop %v2277
        %v2279 = vmul.f32 %v2274, 1.442695
        %v2280 = vpow.pop %v2279
        %v2281 = vmul.f32 %v2275, 1.442695
        %v2282 = vpow.pop %v2281
        %v2283 = vmul.f32 %v2276, 1.442695
        %v2284 = vpow.pop %v2283
        %v2285 = vld [vmem:[%s239] sm:$0xff]
        %v2286 = vld [vmem:[%s239 + $0x8] sm:$0xff]
        %v2287 = vld [vmem:[%s239 + $0x10] sm:$0xff]
        %v2288 = vld [vmem:[%s239 + $0x18] sm:$0xff]
        %v2289 = vmul.f32 %v2278, %v2285
        %v2290 = vmul.f32 %v2280, %v2286
        %v2291 = vmul.f32 %v2282, %v2287
        %v2292 = vmul.f32 %v2284, %v2288
        %v2293 = vsel %vm2260, %v2289, 0.0
        %2294 = vadd.xlane.f32.xlu0 %v2293
        %v2295 = vpop.xlane.xlu0 %2294
        %v2296 = vsel %vm2260, %v2290, 0.0
        %2297 = vadd.xlane.f32.xlu0 %v2296
        %v2298 = vpop.xlane.xlu0 %2297
        %v2299 = vsel %vm2260, %v2291, 0.0
        %2300 = vadd.xlane.f32.xlu0 %v2299
        %v2301 = vpop.xlane.xlu0 %2300
        %v2302 = vsel %vm2260, %v2292, 0.0
        %2303 = vadd.xlane.f32.xlu0 %v2302
        %v2304 = vpop.xlane.xlu0 %2303
        %v2305 = vrcp.pop %v2295
        %v2306 = vrcp.pop %v2298
        %v2307 = vrcp.pop %v2301
        %v2308 = vrcp.pop %v2304
        %v2309 = vmul.f32 %v2289, %v2305
        %v2310 = vmul.f32 %v2290, %v2306
        %v2311 = vmul.f32 %v2291, %v2307
        %v2312 = vmul.f32 %v2292, %v2308
        %v2313 = vld [vmem:[%s246] sm:$0xf]
        %v2314 = vld [vmem:[%s246 + $0x4] sm:$0xf]
        %v2315 = vld [vmem:[%s246 + $0x8] sm:$0x3]
        %v2316 = vld [vmem:[%s246 + $0xc] sm:$0xf]
        %v2317 = vld [vmem:[%s246 + $0x10] sm:$0xf]
        %v2318 = vld [vmem:[%s246 + $0x14] sm:$0x3]
        %v2319 = vld [vmem:[%s246 + $0x18] sm:$0xf]
        %v2320 = vld [vmem:[%s246 + $0x1c] sm:$0xf]
        %v2321 = vld [vmem:[%s246 + $0x20] sm:$0x3]
        %v2322 = vld [vmem:[%s246 + $0x24] sm:$0xf]
        %v2323 = vld [vmem:[%s246 + $0x28] sm:$0xf]
        %v2324 = vld [vmem:[%s246 + $0x2c] sm:$0x3]
        %v2325 = vld [vmem:[%s246 + $0x30] sm:$0xf]
        %v2326 = vld [vmem:[%s246 + $0x34] sm:$0xf]
        %v2327 = vld [vmem:[%s246 + $0x38] sm:$0x3]
        %v2328 = vld [vmem:[%s246 + $0x3c] sm:$0xf]
        %v2329 = vld [vmem:[%s246 + $0x40] sm:$0xf]
        %v2330 = vld [vmem:[%s246 + $0x44] sm:$0x3]
        %v2331 = vld [vmem:[%s246 + $0x48] sm:$0xf]
        %v2332 = vld [vmem:[%s246 + $0x4c] sm:$0xf]
        %v2333 = vld [vmem:[%s246 + $0x50] sm:$0x3]
        %v2334 = vld [vmem:[%s246 + $0x54] sm:$0xf]
        %v2335 = vld [vmem:[%s246 + $0x58] sm:$0xf]
        %v2336 = vld [vmem:[%s246 + $0x5c] sm:$0x3]
        %v2337 = vld [vmem:[%s246 + $0x60] sm:$0xf]
        %v2338 = vld [vmem:[%s246 + $0x64] sm:$0xf]
        %v2339 = vld [vmem:[%s246 + $0x68] sm:$0x3]
        %v2340 = vld [vmem:[%s246 + $0x6c] sm:$0xf]
        %v2341 = vld [vmem:[%s246 + $0x70] sm:$0xf]
        %v2342 = vld [vmem:[%s246 + $0x74] sm:$0x3]
        %v2343 = vld [vmem:[%s246 + $0x78] sm:$0xf]
        %v2344 = vld [vmem:[%s246 + $0x7c] sm:$0xf]
        %v2345 = vld [vmem:[%s246 + $0x80] sm:$0x3]
        %v2346 = vld [vmem:[%s246 + $0x84] sm:$0xf]
        %v2347 = vld [vmem:[%s246 + $0x88] sm:$0xf]
        %v2348 = vld [vmem:[%s246 + $0x8c] sm:$0x3]
        %v2349 = vld [vmem:[%s246 + $0x90] sm:$0xf]
        %v2350 = vld [vmem:[%s246 + $0x94] sm:$0xf]
        %v2351 = vld [vmem:[%s246 + $0x98] sm:$0x3]
        %v2352 = vld [vmem:[%s246 + $0x9c] sm:$0xf]
        %v2353 = vld [vmem:[%s246 + $0xa0] sm:$0xf]
        %v2354 = vld [vmem:[%s246 + $0xa4] sm:$0x3]
        %v2355 = vld [vmem:[%s246 + $0xa8] sm:$0xf]
        %v2356 = vld [vmem:[%s246 + $0xac] sm:$0xf]
        %v2357 = vld [vmem:[%s246 + $0xb0] sm:$0x3]
        %v2358 = vld [vmem:[%s246 + $0xb4] sm:$0xf]
        %v2359 = vld [vmem:[%s246 + $0xb8] sm:$0xf]
        %v2360 = vld [vmem:[%s246 + $0xbc] sm:$0x3]
        %v2361 = vld [vmem:[%s246 + $0xc0] sm:$0xf]
        %v2362 = vld [vmem:[%s246 + $0xc4] sm:$0xf]
        %v2363 = vld [vmem:[%s246 + $0xc8] sm:$0x3]
        %v2364 = vld [vmem:[%s246 + $0xcc] sm:$0xf]
        %v2365 = vld [vmem:[%s246 + $0xd0] sm:$0xf]
        %v2366 = vld [vmem:[%s246 + $0xd4] sm:$0x3]
        %v2367 = vld [vmem:[%s246 + $0xd8] sm:$0xf]
        %v2368 = vld [vmem:[%s246 + $0xdc] sm:$0xf]
        %v2369 = vld [vmem:[%s246 + $0xe0] sm:$0x3]
        %v2370 = vld [vmem:[%s246 + $0xe4] sm:$0xf]
        %v2371 = vld [vmem:[%s246 + $0xe8] sm:$0xf]
        %v2372 = vld [vmem:[%s246 + $0xec] sm:$0x3]
        %v2373 = vld [vmem:[%s246 + $0xf0] sm:$0xf]
        %v2374 = vld [vmem:[%s246 + $0xf4] sm:$0xf]
        %v2375 = vld [vmem:[%s246 + $0xf8] sm:$0x3]
        %v2376 = vld [vmem:[%s246 + $0xfc] sm:$0xf]
        %v2377 = vld [vmem:[%s246 + $0x100] sm:$0xf]
        %v2378 = vld [vmem:[%s246 + $0x104] sm:$0x3]
        %v2379 = vld [vmem:[%s246 + $0x108] sm:$0xf]
        %v2380 = vld [vmem:[%s246 + $0x10c] sm:$0xf]
        %v2381 = vld [vmem:[%s246 + $0x110] sm:$0x3]
        %v2382 = vld [vmem:[%s246 + $0x114] sm:$0xf]
        %v2383 = vld [vmem:[%s246 + $0x118] sm:$0xf]
        %v2384 = vld [vmem:[%s246 + $0x11c] sm:$0x3]
        %v2385 = vld [vmem:[%s246 + $0x120] sm:$0xf]
        %v2386 = vld [vmem:[%s246 + $0x124] sm:$0xf]
        %v2387 = vld [vmem:[%s246 + $0x128] sm:$0x3]
        %v2388 = vld [vmem:[%s246 + $0x12c] sm:$0xf]
        %v2389 = vld [vmem:[%s246 + $0x130] sm:$0xf]
        %v2390 = vld [vmem:[%s246 + $0x134] sm:$0x3]
        %v2391 = vld [vmem:[%s246 + $0x138] sm:$0xf]
        %v2392 = vld [vmem:[%s246 + $0x13c] sm:$0xf]
        %v2393 = vld [vmem:[%s246 + $0x140] sm:$0x3]
        %v2394 = vld [vmem:[%s246 + $0x144] sm:$0xf]
        %v2395 = vld [vmem:[%s246 + $0x148] sm:$0xf]
        %v2396 = vld [vmem:[%s246 + $0x14c] sm:$0x3]
        %v2397 = vld [vmem:[%s246 + $0x150] sm:$0xf]
        %v2398 = vld [vmem:[%s246 + $0x154] sm:$0xf]
        %v2399 = vld [vmem:[%s246 + $0x158] sm:$0x3]
        %v2400 = vld [vmem:[%s246 + $0x15c] sm:$0xf]
        %v2401 = vld [vmem:[%s246 + $0x160] sm:$0xf]
        %v2402 = vld [vmem:[%s246 + $0x164] sm:$0x3]
        %v2403 = vld [vmem:[%s246 + $0x168] sm:$0xf]
        %v2404 = vld [vmem:[%s246 + $0x16c] sm:$0xf]
        %v2405 = vld [vmem:[%s246 + $0x170] sm:$0x3]
        %v2406 = vld [vmem:[%s246 + $0x174] sm:$0xf]
        %v2407 = vld [vmem:[%s246 + $0x178] sm:$0xf]
        %v2408 = vld [vmem:[%s246 + $0x17c] sm:$0x3]
        %v2409 = vunpack.c.l.bf16 %v2313
        %v2410 = vunpack.c.l.bf16 %v2314
        %v2411 = vunpack.c.l.bf16 %v2315
        %v2412 = vunpack.c.l.bf16 %v2316
        %v2413 = vunpack.c.l.bf16 %v2317
        %v2414 = vunpack.c.l.bf16 %v2318
        %v2415 = vunpack.c.l.bf16 %v2319
        %v2416 = vunpack.c.l.bf16 %v2320
        %v2417 = vunpack.c.l.bf16 %v2321
        %v2418 = vunpack.c.l.bf16 %v2322
        %v2419 = vunpack.c.l.bf16 %v2323
        %v2420 = vunpack.c.l.bf16 %v2324
        %v2421 = vunpack.c.l.bf16 %v2325
        %v2422 = vunpack.c.l.bf16 %v2326
        %v2423 = vunpack.c.l.bf16 %v2327
        %v2424 = vunpack.c.l.bf16 %v2328
        %v2425 = vunpack.c.l.bf16 %v2329
        %v2426 = vunpack.c.l.bf16 %v2330
        %v2427 = vunpack.c.l.bf16 %v2331
        %v2428 = vunpack.c.l.bf16 %v2332
        %v2429 = vunpack.c.l.bf16 %v2333
        %v2430 = vunpack.c.l.bf16 %v2334
        %v2431 = vunpack.c.l.bf16 %v2335
        %v2432 = vunpack.c.l.bf16 %v2336
        %v2433 = vunpack.c.l.bf16 %v2337
        %v2434 = vunpack.c.l.bf16 %v2338
        %v2435 = vunpack.c.l.bf16 %v2339
        %v2436 = vunpack.c.l.bf16 %v2340
        %v2437 = vunpack.c.l.bf16 %v2341
        %v2438 = vunpack.c.l.bf16 %v2342
        %v2439 = vunpack.c.l.bf16 %v2343
        %v2440 = vunpack.c.l.bf16 %v2344
        %v2441 = vunpack.c.l.bf16 %v2345
        %v2442 = vunpack.c.l.bf16 %v2346
        %v2443 = vunpack.c.l.bf16 %v2347
        %v2444 = vunpack.c.l.bf16 %v2348
        %v2445 = vunpack.c.l.bf16 %v2349
        %v2446 = vunpack.c.l.bf16 %v2350
        %v2447 = vunpack.c.l.bf16 %v2351
        %v2448 = vunpack.c.l.bf16 %v2352
        %v2449 = vunpack.c.l.bf16 %v2353
        %v2450 = vunpack.c.l.bf16 %v2354
        %v2451 = vunpack.c.l.bf16 %v2355
        %v2452 = vunpack.c.l.bf16 %v2356
        %v2453 = vunpack.c.l.bf16 %v2357
        %v2454 = vunpack.c.l.bf16 %v2358
        %v2455 = vunpack.c.l.bf16 %v2359
        %v2456 = vunpack.c.l.bf16 %v2360
        %v2457 = vunpack.c.l.bf16 %v2361
        %v2458 = vunpack.c.l.bf16 %v2362
        %v2459 = vunpack.c.l.bf16 %v2363
        %v2460 = vunpack.c.l.bf16 %v2364
        %v2461 = vunpack.c.l.bf16 %v2365
        %v2462 = vunpack.c.l.bf16 %v2366
        %v2463 = vunpack.c.l.bf16 %v2367
        %v2464 = vunpack.c.l.bf16 %v2368
        %v2465 = vunpack.c.l.bf16 %v2369
        %v2466 = vunpack.c.l.bf16 %v2370
        %v2467 = vunpack.c.l.bf16 %v2371
        %v2468 = vunpack.c.l.bf16 %v2372
        %v2469 = vunpack.c.l.bf16 %v2373
        %v2470 = vunpack.c.l.bf16 %v2374
        %v2471 = vunpack.c.l.bf16 %v2375
        %v2472 = vunpack.c.l.bf16 %v2376
        %v2473 = vunpack.c.l.bf16 %v2377
        %v2474 = vunpack.c.l.bf16 %v2378
        %v2475 = vunpack.c.l.bf16 %v2379
        %v2476 = vunpack.c.l.bf16 %v2380
        %v2477 = vunpack.c.l.bf16 %v2381
        %v2478 = vunpack.c.l.bf16 %v2382
        %v2479 = vunpack.c.l.bf16 %v2383
        %v2480 = vunpack.c.l.bf16 %v2384
        %v2481 = vunpack.c.l.bf16 %v2385
        %v2482 = vunpack.c.l.bf16 %v2386
        %v2483 = vunpack.c.l.bf16 %v2387
        %v2484 = vunpack.c.l.bf16 %v2388
        %v2485 = vunpack.c.l.bf16 %v2389
        %v2486 = vunpack.c.l.bf16 %v2390
        %v2487 = vunpack.c.l.bf16 %v2391
        %v2488 = vunpack.c.l.bf16 %v2392
        %v2489 = vunpack.c.l.bf16 %v2393
        %v2490 = vunpack.c.l.bf16 %v2394
        %v2491 = vunpack.c.l.bf16 %v2395
        %v2492 = vunpack.c.l.bf16 %v2396
        %v2493 = vunpack.c.l.bf16 %v2397
        %v2494 = vunpack.c.l.bf16 %v2398
        %v2495 = vunpack.c.l.bf16 %v2399
        %v2496 = vunpack.c.l.bf16 %v2400
        %v2497 = vunpack.c.l.bf16 %v2401
        %v2498 = vunpack.c.l.bf16 %v2402
        %v2499 = vunpack.c.l.bf16 %v2403
        %v2500 = vunpack.c.l.bf16 %v2404
        %v2501 = vunpack.c.l.bf16 %v2405
        %v2502 = vunpack.c.l.bf16 %v2406
        %v2503 = vunpack.c.l.bf16 %v2407
        %v2504 = vunpack.c.l.bf16 %v2408
        %v2505 = vlaneseq
        %v2506 = vshrl.u32 %v2505, 7
        %v2507 = vsub.s32 0, %v2506
        %v2508 = vrot.slane %v2309, %v2507
        %2510 = vbcast.lane.b32.xlu0 %v2508, 256
        %v2511 = vpop.permute.xlu0 %2510
        %s2513 = sor.u32 256, 8
        %2514 = vbcast.lane.b32.xlu0 %v2508, %s2513
        %v2515 = vpop.permute.xlu0 %2514
        %s2517 = sor.u32 256, 16
        %2518 = vbcast.lane.b32.xlu0 %v2508, %s2517
        %v2519 = vpop.permute.xlu0 %2518
        %v2520 = vlaneseq
        %v2521 = vshrl.u32 %v2520, 7
        %v2522 = vsub.s32 1, %v2521
        %v2523 = vrot.slane %v2309, %v2522
        %2525 = vbcast.lane.b32.xlu0 %v2523, 256
        %v2526 = vpop.permute.xlu0 %2525
        %s2528 = sor.u32 256, 8
        %2529 = vbcast.lane.b32.xlu0 %v2523, %s2528
        %v2530 = vpop.permute.xlu0 %2529
        %s2532 = sor.u32 256, 16
        %2533 = vbcast.lane.b32.xlu0 %v2523, %s2532
        %v2534 = vpop.permute.xlu0 %2533
        %v2535 = vlaneseq
        %v2536 = vshrl.u32 %v2535, 7
        %v2537 = vsub.s32 2, %v2536
        %v2538 = vrot.slane %v2309, %v2537
        %2540 = vbcast.lane.b32.xlu0 %v2538, 256
        %v2541 = vpop.permute.xlu0 %2540
        %s2543 = sor.u32 256, 8
        %2544 = vbcast.lane.b32.xlu0 %v2538, %s2543
        %v2545 = vpop.permute.xlu0 %2544
        %s2547 = sor.u32 256, 16
        %2548 = vbcast.lane.b32.xlu0 %v2538, %s2547
        %v2549 = vpop.permute.xlu0 %2548
        %v2550 = vlaneseq
        %v2551 = vshrl.u32 %v2550, 7
        %v2552 = vsub.s32 3, %v2551
        %v2553 = vrot.slane %v2309, %v2552
        %2555 = vbcast.lane.b32.xlu0 %v2553, 256
        %v2556 = vpop.permute.xlu0 %2555
        %s2558 = sor.u32 256, 8
        %2559 = vbcast.lane.b32.xlu0 %v2553, %s2558
        %v2560 = vpop.permute.xlu0 %2559
        %s2562 = sor.u32 256, 16
        %2563 = vbcast.lane.b32.xlu0 %v2553, %s2562
        %v2564 = vpop.permute.xlu0 %2563
        %v2565 = vlaneseq
        %v2566 = vshrl.u32 %v2565, 7
        %v2567 = vsub.s32 4, %v2566
        %v2568 = vrot.slane %v2309, %v2567
        %2570 = vbcast.lane.b32.xlu0 %v2568, 256
        %v2571 = vpop.permute.xlu0 %2570
        %s2573 = sor.u32 256, 8
        %2574 = vbcast.lane.b32.xlu0 %v2568, %s2573
        %v2575 = vpop.permute.xlu0 %2574
        %s2577 = sor.u32 256, 16
        %2578 = vbcast.lane.b32.xlu0 %v2568, %s2577
        %v2579 = vpop.permute.xlu0 %2578
        %v2580 = vlaneseq
        %v2581 = vshrl.u32 %v2580, 7
        %v2582 = vsub.s32 5, %v2581
        %v2583 = vrot.slane %v2309, %v2582
        %2585 = vbcast.lane.b32.xlu0 %v2583, 256
        %v2586 = vpop.permute.xlu0 %2585
        %s2588 = sor.u32 256, 8
        %2589 = vbcast.lane.b32.xlu0 %v2583, %s2588
        %v2590 = vpop.permute.xlu0 %2589
        %s2592 = sor.u32 256, 16
        %2593 = vbcast.lane.b32.xlu0 %v2583, %s2592
        %v2594 = vpop.permute.xlu0 %2593
        %v2595 = vlaneseq
        %v2596 = vshrl.u32 %v2595, 7
        %v2597 = vsub.s32 6, %v2596
        %v2598 = vrot.slane %v2309, %v2597
        %2600 = vbcast.lane.b32.xlu0 %v2598, 256
        %v2601 = vpop.permute.xlu0 %2600
        %s2603 = sor.u32 256, 8
        %2604 = vbcast.lane.b32.xlu0 %v2598, %s2603
        %v2605 = vpop.permute.xlu0 %2604
        %s2607 = sor.u32 256, 16
        %2608 = vbcast.lane.b32.xlu0 %v2598, %s2607
        %v2609 = vpop.permute.xlu0 %2608
        %v2610 = vlaneseq
        %v2611 = vshrl.u32 %v2610, 7
        %v2612 = vsub.s32 7, %v2611
        %v2613 = vrot.slane %v2309, %v2612
        %2615 = vbcast.lane.b32.xlu0 %v2613, 256
        %v2616 = vpop.permute.xlu0 %2615
        %s2618 = sor.u32 256, 8
        %2619 = vbcast.lane.b32.xlu0 %v2613, %s2618
        %v2620 = vpop.permute.xlu0 %2619
        %s2622 = sor.u32 256, 16
        %2623 = vbcast.lane.b32.xlu0 %v2613, %s2622
        %v2624 = vpop.permute.xlu0 %2623
        %v2625 = vlaneseq
        %v2626 = vshrl.u32 %v2625, 7
        %v2627 = vsub.s32 0, %v2626
        %v2628 = vrot.slane %v2310, %v2627
        %2630 = vbcast.lane.b32.xlu0 %v2628, 256
        %v2631 = vpop.permute.xlu0 %2630
        %s2633 = sor.u32 256, 8
        %2634 = vbcast.lane.b32.xlu0 %v2628, %s2633
        %v2635 = vpop.permute.xlu0 %2634
        %s2637 = sor.u32 256, 16
        %2638 = vbcast.lane.b32.xlu0 %v2628, %s2637
        %v2639 = vpop.permute.xlu0 %2638
        %v2640 = vlaneseq
        %v2641 = vshrl.u32 %v2640, 7
        %v2642 = vsub.s32 1, %v2641
        %v2643 = vrot.slane %v2310, %v2642
        %2645 = vbcast.lane.b32.xlu0 %v2643, 256
        %v2646 = vpop.permute.xlu0 %2645
        %s2648 = sor.u32 256, 8
        %2649 = vbcast.lane.b32.xlu0 %v2643, %s2648
        %v2650 = vpop.permute.xlu0 %2649
        %s2652 = sor.u32 256, 16
        %2653 = vbcast.lane.b32.xlu0 %v2643, %s2652
        %v2654 = vpop.permute.xlu0 %2653
        %v2655 = vlaneseq
        %v2656 = vshrl.u32 %v2655, 7
        %v2657 = vsub.s32 2, %v2656
        %v2658 = vrot.slane %v2310, %v2657
        %2660 = vbcast.lane.b32.xlu0 %v2658, 256
        %v2661 = vpop.permute.xlu0 %2660
        %s2663 = sor.u32 256, 8
        %2664 = vbcast.lane.b32.xlu0 %v2658, %s2663
        %v2665 = vpop.permute.xlu0 %2664
        %s2667 = sor.u32 256, 16
        %2668 = vbcast.lane.b32.xlu0 %v2658, %s2667
        %v2669 = vpop.permute.xlu0 %2668
        %v2670 = vlaneseq
        %v2671 = vshrl.u32 %v2670, 7
        %v2672 = vsub.s32 3, %v2671
        %v2673 = vrot.slane %v2310, %v2672
        %2675 = vbcast.lane.b32.xlu0 %v2673, 256
        %v2676 = vpop.permute.xlu0 %2675
        %s2678 = sor.u32 256, 8
        %2679 = vbcast.lane.b32.xlu0 %v2673, %s2678
        %v2680 = vpop.permute.xlu0 %2679
        %s2682 = sor.u32 256, 16
        %2683 = vbcast.lane.b32.xlu0 %v2673, %s2682
        %v2684 = vpop.permute.xlu0 %2683
        %v2685 = vlaneseq
        %v2686 = vshrl.u32 %v2685, 7
        %v2687 = vsub.s32 4, %v2686
        %v2688 = vrot.slane %v2310, %v2687
        %2690 = vbcast.lane.b32.xlu0 %v2688, 256
        %v2691 = vpop.permute.xlu0 %2690
        %s2693 = sor.u32 256, 8
        %2694 = vbcast.lane.b32.xlu0 %v2688, %s2693
        %v2695 = vpop.permute.xlu0 %2694
        %s2697 = sor.u32 256, 16
        %2698 = vbcast.lane.b32.xlu0 %v2688, %s2697
        %v2699 = vpop.permute.xlu0 %2698
        %v2700 = vlaneseq
        %v2701 = vshrl.u32 %v2700, 7
        %v2702 = vsub.s32 5, %v2701
        %v2703 = vrot.slane %v2310, %v2702
        %2705 = vbcast.lane.b32.xlu0 %v2703, 256
        %v2706 = vpop.permute.xlu0 %2705
        %s2708 = sor.u32 256, 8
        %2709 = vbcast.lane.b32.xlu0 %v2703, %s2708
        %v2710 = vpop.permute.xlu0 %2709
        %s2712 = sor.u32 256, 16
        %2713 = vbcast.lane.b32.xlu0 %v2703, %s2712
        %v2714 = vpop.permute.xlu0 %2713
        %v2715 = vlaneseq
        %v2716 = vshrl.u32 %v2715, 7
        %v2717 = vsub.s32 6, %v2716
        %v2718 = vrot.slane %v2310, %v2717
        %2720 = vbcast.lane.b32.xlu0 %v2718, 256
        %v2721 = vpop.permute.xlu0 %2720
        %s2723 = sor.u32 256, 8
        %2724 = vbcast.lane.b32.xlu0 %v2718, %s2723
        %v2725 = vpop.permute.xlu0 %2724
        %s2727 = sor.u32 256, 16
        %2728 = vbcast.lane.b32.xlu0 %v2718, %s2727
        %v2729 = vpop.permute.xlu0 %2728
        %v2730 = vlaneseq
        %v2731 = vshrl.u32 %v2730, 7
        %v2732 = vsub.s32 7, %v2731
        %v2733 = vrot.slane %v2310, %v2732
        %2735 = vbcast.lane.b32.xlu0 %v2733, 256
        %v2736 = vpop.permute.xlu0 %2735
        %s2738 = sor.u32 256, 8
        %2739 = vbcast.lane.b32.xlu0 %v2733, %s2738
        %v2740 = vpop.permute.xlu0 %2739
        %s2742 = sor.u32 256, 16
        %2743 = vbcast.lane.b32.xlu0 %v2733, %s2742
        %v2744 = vpop.permute.xlu0 %2743
        %v2745 = vlaneseq
        %v2746 = vshrl.u32 %v2745, 7
        %v2747 = vsub.s32 0, %v2746
        %v2748 = vrot.slane %v2311, %v2747
        %2750 = vbcast.lane.b32.xlu0 %v2748, 256
        %v2751 = vpop.permute.xlu0 %2750
        %s2753 = sor.u32 256, 8
        %2754 = vbcast.lane.b32.xlu0 %v2748, %s2753
        %v2755 = vpop.permute.xlu0 %2754
        %s2757 = sor.u32 256, 16
        %2758 = vbcast.lane.b32.xlu0 %v2748, %s2757
        %v2759 = vpop.permute.xlu0 %2758
        %v2760 = vlaneseq
        %v2761 = vshrl.u32 %v2760, 7
        %v2762 = vsub.s32 1, %v2761
        %v2763 = vrot.slane %v2311, %v2762
        %2765 = vbcast.lane.b32.xlu0 %v2763, 256
        %v2766 = vpop.permute.xlu0 %2765
        %s2768 = sor.u32 256, 8
        %2769 = vbcast.lane.b32.xlu0 %v2763, %s2768
        %v2770 = vpop.permute.xlu0 %2769
        %s2772 = sor.u32 256, 16
        %2773 = vbcast.lane.b32.xlu0 %v2763, %s2772
        %v2774 = vpop.permute.xlu0 %2773
        %v2775 = vlaneseq
        %v2776 = vshrl.u32 %v2775, 7
        %v2777 = vsub.s32 2, %v2776
        %v2778 = vrot.slane %v2311, %v2777
        %2780 = vbcast.lane.b32.xlu0 %v2778, 256
        %v2781 = vpop.permute.xlu0 %2780
        %s2783 = sor.u32 256, 8
        %2784 = vbcast.lane.b32.xlu0 %v2778, %s2783
        %v2785 = vpop.permute.xlu0 %2784
        %s2787 = sor.u32 256, 16
        %2788 = vbcast.lane.b32.xlu0 %v2778, %s2787
        %v2789 = vpop.permute.xlu0 %2788
        %v2790 = vlaneseq
        %v2791 = vshrl.u32 %v2790, 7
        %v2792 = vsub.s32 3, %v2791
        %v2793 = vrot.slane %v2311, %v2792
        %2795 = vbcast.lane.b32.xlu0 %v2793, 256
        %v2796 = vpop.permute.xlu0 %2795
        %s2798 = sor.u32 256, 8
        %2799 = vbcast.lane.b32.xlu0 %v2793, %s2798
        %v2800 = vpop.permute.xlu0 %2799
        %s2802 = sor.u32 256, 16
        %2803 = vbcast.lane.b32.xlu0 %v2793, %s2802
        %v2804 = vpop.permute.xlu0 %2803
        %v2805 = vlaneseq
        %v2806 = vshrl.u32 %v2805, 7
        %v2807 = vsub.s32 4, %v2806
        %v2808 = vrot.slane %v2311, %v2807
        %2810 = vbcast.lane.b32.xlu0 %v2808, 256
        %v2811 = vpop.permute.xlu0 %2810
        %s2813 = sor.u32 256, 8
        %2814 = vbcast.lane.b32.xlu0 %v2808, %s2813
        %v2815 = vpop.permute.xlu0 %2814
        %s2817 = sor.u32 256, 16
        %2818 = vbcast.lane.b32.xlu0 %v2808, %s2817
        %v2819 = vpop.permute.xlu0 %2818
        %v2820 = vlaneseq
        %v2821 = vshrl.u32 %v2820, 7
        %v2822 = vsub.s32 5, %v2821
        %v2823 = vrot.slane %v2311, %v2822
        %2825 = vbcast.lane.b32.xlu0 %v2823, 256
        %v2826 = vpop.permute.xlu0 %2825
        %s2828 = sor.u32 256, 8
        %2829 = vbcast.lane.b32.xlu0 %v2823, %s2828
        %v2830 = vpop.permute.xlu0 %2829
        %s2832 = sor.u32 256, 16
        %2833 = vbcast.lane.b32.xlu0 %v2823, %s2832
        %v2834 = vpop.permute.xlu0 %2833
        %v2835 = vlaneseq
        %v2836 = vshrl.u32 %v2835, 7
        %v2837 = vsub.s32 6, %v2836
        %v2838 = vrot.slane %v2311, %v2837
        %2840 = vbcast.lane.b32.xlu0 %v2838, 256
        %v2841 = vpop.permute.xlu0 %2840
        %s2843 = sor.u32 256, 8
        %2844 = vbcast.lane.b32.xlu0 %v2838, %s2843
        %v2845 = vpop.permute.xlu0 %2844
        %s2847 = sor.u32 256, 16
        %2848 = vbcast.lane.b32.xlu0 %v2838, %s2847
        %v2849 = vpop.permute.xlu0 %2848
        %v2850 = vlaneseq
        %v2851 = vshrl.u32 %v2850, 7
        %v2852 = vsub.s32 7, %v2851
        %v2853 = vrot.slane %v2311, %v2852
        %2855 = vbcast.lane.b32.xlu0 %v2853, 256
        %v2856 = vpop.permute.xlu0 %2855
        %s2858 = sor.u32 256, 8
        %2859 = vbcast.lane.b32.xlu0 %v2853, %s2858
        %v2860 = vpop.permute.xlu0 %2859
        %s2862 = sor.u32 256, 16
        %2863 = vbcast.lane.b32.xlu0 %v2853, %s2862
        %v2864 = vpop.permute.xlu0 %2863
        %v2865 = vlaneseq
        %v2866 = vshrl.u32 %v2865, 7
        %v2867 = vsub.s32 0, %v2866
        %v2868 = vrot.slane %v2312, %v2867
        %2870 = vbcast.lane.b32.xlu0 %v2868, 256
        %v2871 = vpop.permute.xlu0 %2870
        %s2873 = sor.u32 256, 8
        %2874 = vbcast.lane.b32.xlu0 %v2868, %s2873
        %v2875 = vpop.permute.xlu0 %2874
        %s2877 = sor.u32 256, 16
        %2878 = vbcast.lane.b32.xlu0 %v2868, %s2877
        %v2879 = vpop.permute.xlu0 %2878
        %v2880 = vlaneseq
        %v2881 = vshrl.u32 %v2880, 7
        %v2882 = vsub.s32 1, %v2881
        %v2883 = vrot.slane %v2312, %v2882
        %2885 = vbcast.lane.b32.xlu0 %v2883, 256
        %v2886 = vpop.permute.xlu0 %2885
        %s2888 = sor.u32 256, 8
        %2889 = vbcast.lane.b32.xlu0 %v2883, %s2888
        %v2890 = vpop.permute.xlu0 %2889
        %s2892 = sor.u32 256, 16
        %2893 = vbcast.lane.b32.xlu0 %v2883, %s2892
        %v2894 = vpop.permute.xlu0 %2893
        %v2895 = vlaneseq
        %v2896 = vshrl.u32 %v2895, 7
        %v2897 = vsub.s32 2, %v2896
        %v2898 = vrot.slane %v2312, %v2897
        %2900 = vbcast.lane.b32.xlu0 %v2898, 256
        %v2901 = vpop.permute.xlu0 %2900
        %s2903 = sor.u32 256, 8
        %2904 = vbcast.lane.b32.xlu0 %v2898, %s2903
        %v2905 = vpop.permute.xlu0 %2904
        %s2907 = sor.u32 256, 16
        %2908 = vbcast.lane.b32.xlu0 %v2898, %s2907
        %v2909 = vpop.permute.xlu0 %2908
        %v2910 = vlaneseq
        %v2911 = vshrl.u32 %v2910, 7
        %v2912 = vsub.s32 3, %v2911
        %v2913 = vrot.slane %v2312, %v2912
        %2915 = vbcast.lane.b32.xlu0 %v2913, 256
        %v2916 = vpop.permute.xlu0 %2915
        %s2918 = sor.u32 256, 8
        %2919 = vbcast.lane.b32.xlu0 %v2913, %s2918
        %v2920 = vpop.permute.xlu0 %2919
        %s2922 = sor.u32 256, 16
        %2923 = vbcast.lane.b32.xlu0 %v2913, %s2922
        %v2924 = vpop.permute.xlu0 %2923
        %v2925 = vlaneseq
        %v2926 = vshrl.u32 %v2925, 7
        %v2927 = vsub.s32 4, %v2926
        %v2928 = vrot.slane %v2312, %v2927
        %2930 = vbcast.lane.b32.xlu0 %v2928, 256
        %v2931 = vpop.permute.xlu0 %2930
        %s2933 = sor.u32 256, 8
        %2934 = vbcast.lane.b32.xlu0 %v2928, %s2933
        %v2935 = vpop.permute.xlu0 %2934
        %s2937 = sor.u32 256, 16
        %2938 = vbcast.lane.b32.xlu0 %v2928, %s2937
        %v2939 = vpop.permute.xlu0 %2938
        %v2940 = vlaneseq
        %v2941 = vshrl.u32 %v2940, 7
        %v2942 = vsub.s32 5, %v2941
        %v2943 = vrot.slane %v2312, %v2942
        %2945 = vbcast.lane.b32.xlu0 %v2943, 256
        %v2946 = vpop.permute.xlu0 %2945
        %s2948 = sor.u32 256, 8
        %2949 = vbcast.lane.b32.xlu0 %v2943, %s2948
        %v2950 = vpop.permute.xlu0 %2949
        %s2952 = sor.u32 256, 16
        %2953 = vbcast.lane.b32.xlu0 %v2943, %s2952
        %v2954 = vpop.permute.xlu0 %2953
        %v2955 = vlaneseq
        %v2956 = vshrl.u32 %v2955, 7
        %v2957 = vsub.s32 6, %v2956
        %v2958 = vrot.slane %v2312, %v2957
        %2960 = vbcast.lane.b32.xlu0 %v2958, 256
        %v2961 = vpop.permute.xlu0 %2960
        %s2963 = sor.u32 256, 8
        %2964 = vbcast.lane.b32.xlu0 %v2958, %s2963
        %v2965 = vpop.permute.xlu0 %2964
        %s2967 = sor.u32 256, 16
        %2968 = vbcast.lane.b32.xlu0 %v2958, %s2967
        %v2969 = vpop.permute.xlu0 %2968
        %v2970 = vlaneseq
        %v2971 = vshrl.u32 %v2970, 7
        %v2972 = vsub.s32 7, %v2971
        %v2973 = vrot.slane %v2312, %v2972
        %2975 = vbcast.lane.b32.xlu0 %v2973, 256
        %v2976 = vpop.permute.xlu0 %2975
        %s2978 = sor.u32 256, 8
        %2979 = vbcast.lane.b32.xlu0 %v2973, %s2978
        %v2980 = vpop.permute.xlu0 %2979
        %s2982 = sor.u32 256, 16
        %2983 = vbcast.lane.b32.xlu0 %v2973, %s2982
        %v2984 = vpop.permute.xlu0 %2983
        %v2985 = vmul.f32 %v2511, %v2409
        %v2986 = vmul.f32 %v2515, %v2410
        %v2987 = vmul.f32 %v2519, %v2411
        %v2988 = vmul.f32 %v2526, %v2412
        %v2989 = vmul.f32 %v2530, %v2413
        %v2990 = vmul.f32 %v2534, %v2414
        %v2991 = vmul.f32 %v2541, %v2415
        %v2992 = vmul.f32 %v2545, %v2416
        %v2993 = vmul.f32 %v2549, %v2417
        %v2994 = vmul.f32 %v2556, %v2418
        %v2995 = vmul.f32 %v2560, %v2419
        %v2996 = vmul.f32 %v2564, %v2420
        %v2997 = vmul.f32 %v2571, %v2421
        %v2998 = vmul.f32 %v2575, %v2422
        %v2999 = vmul.f32 %v2579, %v2423
        %v3000 = vmul.f32 %v2586, %v2424
        %v3001 = vmul.f32 %v2590, %v2425
        %v3002 = vmul.f32 %v2594, %v2426
        %v3003 = vmul.f32 %v2601, %v2427
        %v3004 = vmul.f32 %v2605, %v2428
        %v3005 = vmul.f32 %v2609, %v2429
        %v3006 = vmul.f32 %v2616, %v2430
        %v3007 = vmul.f32 %v2620, %v2431
        %v3008 = vmul.f32 %v2624, %v2432
        %v3009 = vmul.f32 %v2631, %v2433
        %v3010 = vmul.f32 %v2635, %v2434
        %v3011 = vmul.f32 %v2639, %v2435
        %v3012 = vmul.f32 %v2646, %v2436
        %v3013 = vmul.f32 %v2650, %v2437
        %v3014 = vmul.f32 %v2654, %v2438
        %v3015 = vmul.f32 %v2661, %v2439
        %v3016 = vmul.f32 %v2665, %v2440
        %v3017 = vmul.f32 %v2669, %v2441
        %v3018 = vmul.f32 %v2676, %v2442
        %v3019 = vmul.f32 %v2680, %v2443
        %v3020 = vmul.f32 %v2684, %v2444
        %v3021 = vmul.f32 %v2691, %v2445
        %v3022 = vmul.f32 %v2695, %v2446
        %v3023 = vmul.f32 %v2699, %v2447
        %v3024 = vmul.f32 %v2706, %v2448
        %v3025 = vmul.f32 %v2710, %v2449
        %v3026 = vmul.f32 %v2714, %v2450
        %v3027 = vmul.f32 %v2721, %v2451
        %v3028 = vmul.f32 %v2725, %v2452
        %v3029 = vmul.f32 %v2729, %v2453
        %v3030 = vmul.f32 %v2736, %v2454
        %v3031 = vmul.f32 %v2740, %v2455
        %v3032 = vmul.f32 %v2744, %v2456
        %v3033 = vmul.f32 %v2751, %v2457
        %v3034 = vmul.f32 %v2755, %v2458
        %v3035 = vmul.f32 %v2759, %v2459
        %v3036 = vmul.f32 %v2766, %v2460
        %v3037 = vmul.f32 %v2770, %v2461
        %v3038 = vmul.f32 %v2774, %v2462
        %v3039 = vmul.f32 %v2781, %v2463
        %v3040 = vmul.f32 %v2785, %v2464
        %v3041 = vmul.f32 %v2789, %v2465
        %v3042 = vmul.f32 %v2796, %v2466
        %v3043 = vmul.f32 %v2800, %v2467
        %v3044 = vmul.f32 %v2804, %v2468
        %v3045 = vmul.f32 %v2811, %v2469
        %v3046 = vmul.f32 %v2815, %v2470
        %v3047 = vmul.f32 %v2819, %v2471
        %v3048 = vmul.f32 %v2826, %v2472
        %v3049 = vmul.f32 %v2830, %v2473
        %v3050 = vmul.f32 %v2834, %v2474
        %v3051 = vmul.f32 %v2841, %v2475
        %v3052 = vmul.f32 %v2845, %v2476
        %v3053 = vmul.f32 %v2849, %v2477
        %v3054 = vmul.f32 %v2856, %v2478
        %v3055 = vmul.f32 %v2860, %v2479
        %v3056 = vmul.f32 %v2864, %v2480
        %v3057 = vmul.f32 %v2871, %v2481
        %v3058 = vmul.f32 %v2875, %v2482
        %v3059 = vmul.f32 %v2879, %v2483
        %v3060 = vmul.f32 %v2886, %v2484
        %v3061 = vmul.f32 %v2890, %v2485
        %v3062 = vmul.f32 %v2894, %v2486
        %v3063 = vmul.f32 %v2901, %v2487
        %v3064 = vmul.f32 %v2905, %v2488
        %v3065 = vmul.f32 %v2909, %v2489
        %v3066 = vmul.f32 %v2916, %v2490
        %v3067 = vmul.f32 %v2920, %v2491
        %v3068 = vmul.f32 %v2924, %v2492
        %v3069 = vmul.f32 %v2931, %v2493
        %v3070 = vmul.f32 %v2935, %v2494
        %v3071 = vmul.f32 %v2939, %v2495
        %v3072 = vmul.f32 %v2946, %v2496
        %v3073 = vmul.f32 %v2950, %v2497
        %v3074 = vmul.f32 %v2954, %v2498
        %v3075 = vmul.f32 %v2961, %v2499
        %v3076 = vmul.f32 %v2965, %v2500
        %v3077 = vmul.f32 %v2969, %v2501
        %v3078 = vmul.f32 %v2976, %v2502
        %v3079 = vmul.f32 %v2980, %v2503
        %v3080 = vmul.f32 %v2984, %v2504
        %v3081 = vadd.f32 %v2985, %v2986
        %vm3082 = vcmask 1043456
        %v3083 = vsel %vm3082, %v2987, 0.0
        %v3084 = vadd.f32 %v3081, %v3083
        %v3085 = vrot.slane %v3084, 4
        %v3086 = vadd.f32 %v3084, %v3085
        %v3087 = vrot.slane %v3086, 2
        %v3088 = vadd.f32 %v3086, %v3087
        %v3089 = vrot.slane %v3088, 1
        %v3090 = vadd.f32 %v3088, %v3089
        %v3091 = vadd.f32 %v2988, %v2989
        %v3092 = vsel %vm3082, %v2990, 0.0
        %v3093 = vadd.f32 %v3091, %v3092
        %v3094 = vrot.slane %v3093, 4
        %v3095 = vadd.f32 %v3093, %v3094
        %v3096 = vrot.slane %v3095, 2
        %v3097 = vadd.f32 %v3095, %v3096
        %v3098 = vrot.slane %v3097, 1
        %v3099 = vadd.f32 %v3097, %v3098
        %v3100 = vadd.f32 %v2991, %v2992
        %v3101 = vsel %vm3082, %v2993, 0.0
        %v3102 = vadd.f32 %v3100, %v3101
        %v3103 = vrot.slane %v3102, 4
        %v3104 = vadd.f32 %v3102, %v3103
        %v3105 = vrot.slane %v3104, 2
        %v3106 = vadd.f32 %v3104, %v3105
        %v3107 = vrot.slane %v3106, 1
        %v3108 = vadd.f32 %v3106, %v3107
        %v3109 = vadd.f32 %v2994, %v2995
        %v3110 = vsel %vm3082, %v2996, 0.0
        %v3111 = vadd.f32 %v3109, %v3110
        %v3112 = vrot.slane %v3111, 4
        %v3113 = vadd.f32 %v3111, %v3112
        %v3114 = vrot.slane %v3113, 2
        %v3115 = vadd.f32 %v3113, %v3114
        %v3116 = vrot.slane %v3115, 1
        %v3117 = vadd.f32 %v3115, %v3116
        %v3118 = vadd.f32 %v2997, %v2998
        %v3119 = vsel %vm3082, %v2999, 0.0
        %v3120 = vadd.f32 %v3118, %v3119
        %v3121 = vrot.slane %v3120, 4
        %v3122 = vadd.f32 %v3120, %v3121
        %v3123 = vrot.slane %v3122, 2
        %v3124 = vadd.f32 %v3122, %v3123
        %v3125 = vrot.slane %v3124, 1
        %v3126 = vadd.f32 %v3124, %v3125
        %v3127 = vadd.f32 %v3000, %v3001
        %v3128 = vsel %vm3082, %v3002, 0.0
        %v3129 = vadd.f32 %v3127, %v3128
        %v3130 = vrot.slane %v3129, 4
        %v3131 = vadd.f32 %v3129, %v3130
        %v3132 = vrot.slane %v3131, 2
        %v3133 = vadd.f32 %v3131, %v3132
        %v3134 = vrot.slane %v3133, 1
        %v3135 = vadd.f32 %v3133, %v3134
        %v3136 = vadd.f32 %v3003, %v3004
        %v3137 = vsel %vm3082, %v3005, 0.0
        %v3138 = vadd.f32 %v3136, %v3137
        %v3139 = vrot.slane %v3138, 4
        %v3140 = vadd.f32 %v3138, %v3139
        %v3141 = vrot.slane %v3140, 2
        %v3142 = vadd.f32 %v3140, %v3141
        %v3143 = vrot.slane %v3142, 1
        %v3144 = vadd.f32 %v3142, %v3143
        %v3145 = vadd.f32 %v3006, %v3007
        %v3146 = vsel %vm3082, %v3008, 0.0
        %v3147 = vadd.f32 %v3145, %v3146
        %v3148 = vrot.slane %v3147, 4
        %v3149 = vadd.f32 %v3147, %v3148
        %v3150 = vrot.slane %v3149, 2
        %v3151 = vadd.f32 %v3149, %v3150
        %v3152 = vrot.slane %v3151, 1
        %v3153 = vadd.f32 %v3151, %v3152
        %v3154 = vadd.f32 %v3009, %v3010
        %v3155 = vsel %vm3082, %v3011, 0.0
        %v3156 = vadd.f32 %v3154, %v3155
        %v3157 = vrot.slane %v3156, 4
        %v3158 = vadd.f32 %v3156, %v3157
        %v3159 = vrot.slane %v3158, 2
        %v3160 = vadd.f32 %v3158, %v3159
        %v3161 = vrot.slane %v3160, 1
        %v3162 = vadd.f32 %v3160, %v3161
        %v3163 = vadd.f32 %v3012, %v3013
        %v3164 = vsel %vm3082, %v3014, 0.0
        %v3165 = vadd.f32 %v3163, %v3164
        %v3166 = vrot.slane %v3165, 4
        %v3167 = vadd.f32 %v3165, %v3166
        %v3168 = vrot.slane %v3167, 2
        %v3169 = vadd.f32 %v3167, %v3168
        %v3170 = vrot.slane %v3169, 1
        %v3171 = vadd.f32 %v3169, %v3170
        %v3172 = vadd.f32 %v3015, %v3016
        %v3173 = vsel %vm3082, %v3017, 0.0
        %v3174 = vadd.f32 %v3172, %v3173
        %v3175 = vrot.slane %v3174, 4
        %v3176 = vadd.f32 %v3174, %v3175
        %v3177 = vrot.slane %v3176, 2
        %v3178 = vadd.f32 %v3176, %v3177
        %v3179 = vrot.slane %v3178, 1
        %v3180 = vadd.f32 %v3178, %v3179
        %v3181 = vadd.f32 %v3018, %v3019
        %v3182 = vsel %vm3082, %v3020, 0.0
        %v3183 = vadd.f32 %v3181, %v3182
        %v3184 = vrot.slane %v3183, 4
        %v3185 = vadd.f32 %v3183, %v3184
        %v3186 = vrot.slane %v3185, 2
        %v3187 = vadd.f32 %v3185, %v3186
        %v3188 = vrot.slane %v3187, 1
        %v3189 = vadd.f32 %v3187, %v3188
        %v3190 = vadd.f32 %v3021, %v3022
        %v3191 = vsel %vm3082, %v3023, 0.0
        %v3192 = vadd.f32 %v3190, %v3191
        %v3193 = vrot.slane %v3192, 4
        %v3194 = vadd.f32 %v3192, %v3193
        %v3195 = vrot.slane %v3194, 2
        %v3196 = vadd.f32 %v3194, %v3195
        %v3197 = vrot.slane %v3196, 1
        %v3198 = vadd.f32 %v3196, %v3197
        %v3199 = vadd.f32 %v3024, %v3025
        %v3200 = vsel %vm3082, %v3026, 0.0
        %v3201 = vadd.f32 %v3199, %v3200
        %v3202 = vrot.slane %v3201, 4
        %v3203 = vadd.f32 %v3201, %v3202
        %v3204 = vrot.slane %v3203, 2
        %v3205 = vadd.f32 %v3203, %v3204
        %v3206 = vrot.slane %v3205, 1
        %v3207 = vadd.f32 %v3205, %v3206
        %v3208 = vadd.f32 %v3027, %v3028
        %v3209 = vsel %vm3082, %v3029, 0.0
        %v3210 = vadd.f32 %v3208, %v3209
        %v3211 = vrot.slane %v3210, 4
        %v3212 = vadd.f32 %v3210, %v3211
        %v3213 = vrot.slane %v3212, 2
        %v3214 = vadd.f32 %v3212, %v3213
        %v3215 = vrot.slane %v3214, 1
        %v3216 = vadd.f32 %v3214, %v3215
        %v3217 = vadd.f32 %v3030, %v3031
        %v3218 = vsel %vm3082, %v3032, 0.0
        %v3219 = vadd.f32 %v3217, %v3218
        %v3220 = vrot.slane %v3219, 4
        %v3221 = vadd.f32 %v3219, %v3220
        %v3222 = vrot.slane %v3221, 2
        %v3223 = vadd.f32 %v3221, %v3222
        %v3224 = vrot.slane %v3223, 1
        %v3225 = vadd.f32 %v3223, %v3224
        %v3226 = vadd.f32 %v3033, %v3034
        %v3227 = vsel %vm3082, %v3035, 0.0
        %v3228 = vadd.f32 %v3226, %v3227
        %v3229 = vrot.slane %v3228, 4
        %v3230 = vadd.f32 %v3228, %v3229
        %v3231 = vrot.slane %v3230, 2
        %v3232 = vadd.f32 %v3230, %v3231
        %v3233 = vrot.slane %v3232, 1
        %v3234 = vadd.f32 %v3232, %v3233
        %v3235 = vadd.f32 %v3036, %v3037
        %v3236 = vsel %vm3082, %v3038, 0.0
        %v3237 = vadd.f32 %v3235, %v3236
        %v3238 = vrot.slane %v3237, 4
        %v3239 = vadd.f32 %v3237, %v3238
        %v3240 = vrot.slane %v3239, 2
        %v3241 = vadd.f32 %v3239, %v3240
        %v3242 = vrot.slane %v3241, 1
        %v3243 = vadd.f32 %v3241, %v3242
        %v3244 = vadd.f32 %v3039, %v3040
        %v3245 = vsel %vm3082, %v3041, 0.0
        %v3246 = vadd.f32 %v3244, %v3245
        %v3247 = vrot.slane %v3246, 4
        %v3248 = vadd.f32 %v3246, %v3247
        %v3249 = vrot.slane %v3248, 2
        %v3250 = vadd.f32 %v3248, %v3249
        %v3251 = vrot.slane %v3250, 1
        %v3252 = vadd.f32 %v3250, %v3251
        %v3253 = vadd.f32 %v3042, %v3043
        %v3254 = vsel %vm3082, %v3044, 0.0
        %v3255 = vadd.f32 %v3253, %v3254
        %v3256 = vrot.slane %v3255, 4
        %v3257 = vadd.f32 %v3255, %v3256
        %v3258 = vrot.slane %v3257, 2
        %v3259 = vadd.f32 %v3257, %v3258
        %v3260 = vrot.slane %v3259, 1
        %v3261 = vadd.f32 %v3259, %v3260
        %v3262 = vadd.f32 %v3045, %v3046
        %v3263 = vsel %vm3082, %v3047, 0.0
        %v3264 = vadd.f32 %v3262, %v3263
        %v3265 = vrot.slane %v3264, 4
        %v3266 = vadd.f32 %v3264, %v3265
        %v3267 = vrot.slane %v3266, 2
        %v3268 = vadd.f32 %v3266, %v3267
        %v3269 = vrot.slane %v3268, 1
        %v3270 = vadd.f32 %v3268, %v3269
        %v3271 = vadd.f32 %v3048, %v3049
        %v3272 = vsel %vm3082, %v3050, 0.0
        %v3273 = vadd.f32 %v3271, %v3272
        %v3274 = vrot.slane %v3273, 4
        %v3275 = vadd.f32 %v3273, %v3274
        %v3276 = vrot.slane %v3275, 2
        %v3277 = vadd.f32 %v3275, %v3276
        %v3278 = vrot.slane %v3277, 1
        %v3279 = vadd.f32 %v3277, %v3278
        %v3280 = vadd.f32 %v3051, %v3052
        %v3281 = vsel %vm3082, %v3053, 0.0
        %v3282 = vadd.f32 %v3280, %v3281
        %v3283 = vrot.slane %v3282, 4
        %v3284 = vadd.f32 %v3282, %v3283
        %v3285 = vrot.slane %v3284, 2
        %v3286 = vadd.f32 %v3284, %v3285
        %v3287 = vrot.slane %v3286, 1
        %v3288 = vadd.f32 %v3286, %v3287
        %v3289 = vadd.f32 %v3054, %v3055
        %v3290 = vsel %vm3082, %v3056, 0.0
        %v3291 = vadd.f32 %v3289, %v3290
        %v3292 = vrot.slane %v3291, 4
        %v3293 = vadd.f32 %v3291, %v3292
        %v3294 = vrot.slane %v3293, 2
        %v3295 = vadd.f32 %v3293, %v3294
        %v3296 = vrot.slane %v3295, 1
        %v3297 = vadd.f32 %v3295, %v3296
        %v3298 = vadd.f32 %v3057, %v3058
        %v3299 = vsel %vm3082, %v3059, 0.0
        %v3300 = vadd.f32 %v3298, %v3299
        %v3301 = vrot.slane %v3300, 4
        %v3302 = vadd.f32 %v3300, %v3301
        %v3303 = vrot.slane %v3302, 2
        %v3304 = vadd.f32 %v3302, %v3303
        %v3305 = vrot.slane %v3304, 1
        %v3306 = vadd.f32 %v3304, %v3305
        %v3307 = vadd.f32 %v3060, %v3061
        %v3308 = vsel %vm3082, %v3062, 0.0
        %v3309 = vadd.f32 %v3307, %v3308
        %v3310 = vrot.slane %v3309, 4
        %v3311 = vadd.f32 %v3309, %v3310
        %v3312 = vrot.slane %v3311, 2
        %v3313 = vadd.f32 %v3311, %v3312
        %v3314 = vrot.slane %v3313, 1
        %v3315 = vadd.f32 %v3313, %v3314
        %v3316 = vadd.f32 %v3063, %v3064
        %v3317 = vsel %vm3082, %v3065, 0.0
        %v3318 = vadd.f32 %v3316, %v3317
        %v3319 = vrot.slane %v3318, 4
        %v3320 = vadd.f32 %v3318, %v3319
        %v3321 = vrot.slane %v3320, 2
        %v3322 = vadd.f32 %v3320, %v3321
        %v3323 = vrot.slane %v3322, 1
        %v3324 = vadd.f32 %v3322, %v3323
        %v3325 = vadd.f32 %v3066, %v3067
        %v3326 = vsel %vm3082, %v3068, 0.0
        %v3327 = vadd.f32 %v3325, %v3326
        %v3328 = vrot.slane %v3327, 4
        %v3329 = vadd.f32 %v3327, %v3328
        %v3330 = vrot.slane %v3329, 2
        %v3331 = vadd.f32 %v3329, %v3330
        %v3332 = vrot.slane %v3331, 1
        %v3333 = vadd.f32 %v3331, %v3332
        %v3334 = vadd.f32 %v3069, %v3070
        %v3335 = vsel %vm3082, %v3071, 0.0
        %v3336 = vadd.f32 %v3334, %v3335
        %v3337 = vrot.slane %v3336, 4
        %v3338 = vadd.f32 %v3336, %v3337
        %v3339 = vrot.slane %v3338, 2
        %v3340 = vadd.f32 %v3338, %v3339
        %v3341 = vrot.slane %v3340, 1
        %v3342 = vadd.f32 %v3340, %v3341
        %v3343 = vadd.f32 %v3072, %v3073
        %v3344 = vsel %vm3082, %v3074, 0.0
        %v3345 = vadd.f32 %v3343, %v3344
        %v3346 = vrot.slane %v3345, 4
        %v3347 = vadd.f32 %v3345, %v3346
        %v3348 = vrot.slane %v3347, 2
        %v3349 = vadd.f32 %v3347, %v3348
        %v3350 = vrot.slane %v3349, 1
        %v3351 = vadd.f32 %v3349, %v3350
        %v3352 = vadd.f32 %v3075, %v3076
        %v3353 = vsel %vm3082, %v3077, 0.0
        %v3354 = vadd.f32 %v3352, %v3353
        %v3355 = vrot.slane %v3354, 4
        %v3356 = vadd.f32 %v3354, %v3355
        %v3357 = vrot.slane %v3356, 2
        %v3358 = vadd.f32 %v3356, %v3357
        %v3359 = vrot.slane %v3358, 1
        %v3360 = vadd.f32 %v3358, %v3359
        %v3361 = vadd.f32 %v3078, %v3079
        %v3362 = vsel %vm3082, %v3080, 0.0
        %v3363 = vadd.f32 %v3361, %v3362
        %v3364 = vrot.slane %v3363, 4
        %v3365 = vadd.f32 %v3363, %v3364
        %v3366 = vrot.slane %v3365, 2
        %v3367 = vadd.f32 %v3365, %v3366
        %v3368 = vrot.slane %v3367, 1
        %v3369 = vadd.f32 %v3367, %v3368
        %vm3402 = vcmask 1041409
        %v3403 = vsel %vm3402, %v3099, %v3090
        %vm3404 = vcmask 1042434
        %v3405 = vsel %vm3404, %v3108, %v3403
        %vm3406 = vcmask 1043459
        %v3407 = vsel %vm3406, %v3117, %v3405
        %vm3408 = vcmask 1044484
        %v3409 = vsel %vm3408, %v3126, %v3407
        %vm3410 = vcmask 1045509
        %v3411 = vsel %vm3410, %v3135, %v3409
        %vm3412 = vcmask 1046534
        %v3413 = vsel %vm3412, %v3144, %v3411
        %vm3414 = vcmask 1047559
        %v3415 = vsel %vm3414, %v3153, %v3413
        %v3416 = vsel %vm3402, %v3171, %v3162
        %v3417 = vsel %vm3404, %v3180, %v3416
        %v3418 = vsel %vm3406, %v3189, %v3417
        %v3419 = vsel %vm3408, %v3198, %v3418
        %v3420 = vsel %vm3410, %v3207, %v3419
        %v3421 = vsel %vm3412, %v3216, %v3420
        %v3422 = vsel %vm3414, %v3225, %v3421
        %v3423 = vsel %vm3402, %v3243, %v3234
        %v3424 = vsel %vm3404, %v3252, %v3423
        %v3425 = vsel %vm3406, %v3261, %v3424
        %v3426 = vsel %vm3408, %v3270, %v3425
        %v3427 = vsel %vm3410, %v3279, %v3426
        %v3428 = vsel %vm3412, %v3288, %v3427
        %v3429 = vsel %vm3414, %v3297, %v3428
        %v3430 = vsel %vm3402, %v3315, %v3306
        %v3431 = vsel %vm3404, %v3324, %v3430
        %v3432 = vsel %vm3406, %v3333, %v3431
        %v3433 = vsel %vm3408, %v3342, %v3432
        %v3434 = vsel %vm3410, %v3351, %v3433
        %v3435 = vsel %vm3412, %v3360, %v3434
        %v3436 = vsel %vm3414, %v3369, %v3435
        %3441 = vst [vmem:[%s227] sm:$0xff] %v3415
        %3442 = vst [vmem:[%s227 + $0x8] sm:$0xff] %v3422
        %3443 = vst [vmem:[%s227 + $0x10] sm:$0xff] %v3429
        %3444 = vst [vmem:[%s227 + $0x18] sm:$0xff] %v3436
        %s3445 = sand.u32 %s125, 1
        %s3446 = scalar_lea.sflag [#allocation3], %s3445
        %s3447 = sand.u32 %s125, 1
        %s3448 = smul.addr %s3447, 32
        %s3449 = scalar_lea.vmem [#allocation2], %s3448
        // Predicated region
        $region37: #{tpu_custom_call.1} parent=35 // pred_check
          %p3450 = pneg %p135
        $region38: #{tpu_custom_call.1} parent=35 // pred_check_branch
          %3452 = sbr.rel (%p3450) target = $region40
        $region39: #{tpu_custom_call.1} parent=35 // pred_region
          %s3453 = smul.u32 4, %s18
          %s3455 = ssub.s32 512, 512
          %3456 = vsyncadd %s3446, %s3455
          %s3457 = smul.addr %s3453, 128
          %s3458 = scalar_lea.hbm %s4, %s3457
          %s3459 = sshll.u32 %s3449, 4
          %s3460 = int_to_ptr.vmem [resolvable:$true] %s3459
          %3465 = dma.vmem_to_hbm [thread:$0]  %s3460, 512, %s3458, %s3446, 128, 128, 8
        $region40: #{tpu_custom_call.1} parent=35 // pred_fallthru
          _
      $region36: #{tpu_custom_call.1} parent=5 // pred_fallthru
        _
      %p3466 = scmp.le.s32.totalorder 2, %s13
      // Predicated region
      $region41: #{tpu_custom_call.1} parent=5 // pred_check
        %p3467 = pneg %p3466
      $region42: #{tpu_custom_call.1} parent=5 // pred_check_branch
        %3469 = sbr.rel (%p3467) target = $region44
      $region43: #{tpu_custom_call.1} parent=5 // pred_region
        %s3470 = ssub.s32 %s13, 2
        // Predicated region
        $region45: #{tpu_custom_call.1} parent=43 // pred_check
          %p3471 = pneg %p141
        $region46: #{tpu_custom_call.1} parent=43 // pred_check_branch
          %3473 = sbr.rel (%p3471) target = $region48
        $region47: #{tpu_custom_call.1} parent=43 // pred_region
          %s3474 = sand.u32 %s126, 1
          %s3475 = scalar_lea.sflag [#allocation3], %s3474
          %s3476 = sand.u32 %s126, 1
          %s3477 = smul.addr %s3476, 32
          %s3478 = scalar_lea.vmem [#allocation2], %s3477
          %3479 = dma.done %s3475, 512
        $region48: #{tpu_custom_call.1} parent=43 // pred_fallthru
          _
      $region44: #{tpu_custom_call.1} parent=5 // pred_fallthru
        _
    $region6: #{tpu_custom_call.1} parent=1 // loop_footer
      %s17 = sadd.s32 1, %s13
    $region7: #{tpu_custom_call.1} parent=1 // loop_footer_branch
      %12 = sbr.rel target = $region3
    $region8: #{tpu_custom_call.1} parent=1 // loop_exit
      _
    %3480 = vsyncpa [#allocation3], 1
    %s3481 = scalar_lea.sflag [#allocation3], 1
    %3482 = vsyncpa %s3481, 1

</llo_original>
